<compile_context>
chip_gen: v6e
topology: v6e:2x2x1
jax: 0.10.0
libtpu: 0.0.40
codegen_flags: <defaults>
</compile_context>

<pallas_src>
import math

import jax
import jax.numpy as jnp
from jax.experimental import pallas as pl
from jax.experimental.pallas import tpu as pltpu


# ----------------------------- Pallas kernel -------------------------------

def _make_mha_kernel(num_heads, head_size):
    H, D = num_heads, head_size
    HD = H * D
    Dh = D // 2

    def kernel(x_ref, wqkv_ref, wproj_ref, b_ref, cos_ref, sin_ref, bias_ref,
               o_ref):
        x = x_ref[...]                                           # (N, C)

        # Fused QKV projection for all heads & all batch rows: one matmul.
        qkv = jnp.dot(x, wqkv_ref[...],
                      preferred_element_type=jnp.float32)        # (N, 3*H*D)
        q = qkv[:, :HD]
        k = qkv[:, HD:2 * HD]
        v = qkv[:, 2 * HD:]

        cos = cos_ref[...]                                       # (N, HD)
        sin = sin_ref[...]                                       # (N, HD), sign-folded

        # RoPE in rotate-half form on the globally deinterleaved layout.
        # Rolling by HD//2 over an axis of length HD swaps the even/odd
        # halves; shift == axis/2 so the roll direction does not matter.
        q = q * cos + pltpu.roll(q, HD // 2, 1) * sin
        k = k * cos + pltpu.roll(k, HD // 2, 1) * sin

        mask_bias = bias_ref[...]                                # (N, N) 0 / -1e30
        wproj = wproj_ref[...]                                   # (HD, C_out)

        head_outs = []
        for h in range(H):                                       # unrolled at trace time
            # Gather head h's even+odd strips into one contiguous (N, D)
            # operand so the score dot contracts over the full D in a single
            # MXU push.
            sl_e = slice(h * Dh, (h + 1) * Dh)                        # even strip
            sl_o = slice(HD // 2 + h * Dh, HD // 2 + (h + 1) * Dh)    # odd strip
            qh = jnp.concatenate([q[:, sl_e], q[:, sl_o]], axis=1)    # (N, D)
            kh = jnp.concatenate([k[:, sl_e], k[:, sl_o]], axis=1)    # (N, D)

            # scores_h over all batch rows at once; (1/sqrt(D) folded into Wq).
            s = jax.lax.dot_general(qh, kh, (((1,), (1,)), ((), ())),
                                    preferred_element_type=jnp.float32)  # (N, N)
            # Block-diagonal causal mask via additive bias (NaN-safe finite).
            s = s + mask_bias
            s = s - jnp.max(s, axis=-1, keepdims=True)
            p = jnp.exp(s)
            p = p * pl.reciprocal(jnp.sum(p, axis=-1, keepdims=True),
                                  approx=True)
            # TODO(synk): attention dropout (p=0.1) is training-only; identity here.

            v_h = v[:, h * D:(h + 1) * D]                             # (N, D)
            head_outs.append(jnp.dot(p, v_h,
                                     preferred_element_type=jnp.float32))

        # Hoisted output projection: one matmul with a 64-deep contraction.
        att = jnp.concatenate(head_outs, axis=1)                 # (N, H*D)
        out = jnp.dot(att, wproj, preferred_element_type=jnp.float32)
        o_ref[...] = out + b_ref[...]                            # (N, C_out)
        # TODO(synk): output dropout (p=0.1) is training-only; identity here.

    return kernel


# -------------------- Host-side (jit-constant) preparation ------------------

def _rope_tables_deinterleaved(head_size, num_heads, seq_len, batch,
                               theta=10000.0):
    """cos / sign-folded-sin tables in the deinterleaved global layout,
    tiled across the stacked batch rows."""
    D, H = head_size, num_heads
    freqs = jnp.exp(jnp.arange(0, D, 2, dtype=jnp.float32)
                    * (-math.log(theta) / D))                        # (D/2,)
    ang = jnp.outer(jnp.arange(seq_len, dtype=jnp.float32), freqs)   # (T, D/2)
    cos_h, sin_h = jnp.cos(ang), jnp.sin(ang)
    # Columns: [h0 evens, ..., h{H-1} evens | h0 odds, ..., h{H-1} odds]
    cos_g = jnp.tile(cos_h, (1, 2 * H))                              # (T, H*D)
    sin_g = jnp.concatenate([jnp.tile(-sin_h, (1, H)),
                             jnp.tile(sin_h, (1, H))], axis=1)       # (T, H*D)
    return jnp.tile(cos_g, (batch, 1)), jnp.tile(sin_g, (batch, 1))  # (B*T, H*D)


def _stack_qkv_weights(wq, wk, wv):
    """Stack per-head (H, C, D) weights into one (C, 3*H*D) array.

    q/k columns are permuted into the deinterleaved layout (evens then odds,
    head-major) so interleaved-pair RoPE becomes a rotate-by-half in-kernel;
    v keeps the original per-head order (must line up with w_proj rows).
    The 1/sqrt(D) attention scale is folded into the q weights.
    """
    H, C, D = wq.shape

    def deinterleave(w):                       # (H, C, D) -> (C, H*D)
        we = jnp.transpose(w[:, :, 0::2], (1, 0, 2)).reshape(C, H * (D // 2))
        wo = jnp.transpose(w[:, :, 1::2], (1, 0, 2)).reshape(C, H * (D // 2))
        return jnp.concatenate([we, wo], axis=1)

    wq_g = deinterleave(wq) * (1.0 / math.sqrt(D))
    wk_g = deinterleave(wk)
    wv_g = jnp.transpose(wv, (1, 0, 2)).reshape(C, H * D)
    return jnp.concatenate([wq_g, wk_g, wv_g], axis=1)               # (C, 3*H*D)


def _blockdiag_causal_bias(batch, seq_len):
    """(B*T, B*T) additive bias: 0 where attention allowed, -1e30 otherwise."""
    N = batch * seq_len
    idx = jnp.arange(N, dtype=jnp.int32)
    same_batch = (idx[:, None] // seq_len) == (idx[None, :] // seq_len)
    causal = idx[None, :] <= idx[:, None]
    return jnp.where(same_batch & causal, 0.0, -1e30).astype(jnp.float32)


# ------------------------------- Wrapper ------------------------------------

@jax.jit
def multi_head_attention(x, params):
    B, T, C = x.shape
    wq = params["wq"]
    H, _, D = wq.shape
    HD = H * D
    w_proj = params["w_proj"]                          # (H*D, C_out)
    C_out = w_proj.shape[1]
    b_proj = params["b_proj"].reshape(1, C_out)
    N = B * T

    w_qkv = _stack_qkv_weights(wq, params["wk"], params["wv"])       # (C, 3HD)
    cos_g, sin_g = _rope_tables_deinterleaved(D, H, T, B)            # (N, HD)
    mask_bias = _blockdiag_causal_bias(B, T)                         # (N, N)

    kernel = _make_mha_kernel(H, D)

    flops = (2 * N * C * 3 * HD                # fused QKV
             + H * (2 * N * N * D)             # scores
             + H * (2 * N * N * D)             # PV
             + 2 * N * HD * C_out)             # output projection
    bytes_accessed = 4 * (N * C + w_qkv.size + w_proj.size + C_out
                          + 2 * N * HD + N * N + N * C_out)
    cost = pl.CostEstimate(flops=flops,
                           transcendentals=H * N * N,
                           bytes_accessed=bytes_accessed)

    out = pl.pallas_call(
        kernel,
        out_shape=jax.ShapeDtypeStruct((N, C_out), jnp.float32),
        cost_estimate=cost,
    )(x.reshape(N, C), w_qkv, w_proj, b_proj, cos_g, sin_g, mask_bias)
    return out.reshape(B, T, C_out)


# ----------------------------- Pure-JAX reference ----------------------------

def reference(x, params):
    B, T, C = x.shape
    wq, wk, wv = params["wq"], params["wk"], params["wv"]
    H, _, D = wq.shape
    freqs = jnp.exp(jnp.arange(0, D, 2, dtype=jnp.float32)
                    * (-math.log(10000.0) / D))
    ang = jnp.outer(jnp.arange(T, dtype=jnp.float32), freqs)
    ca, sa = jnp.cos(ang), jnp.sin(ang)

    def rope(z):
        zr = z.reshape(B, T, D // 2, 2)
        a, b = zr[..., 0], zr[..., 1]
        ra = a * ca - b * sa
        rb = a * sa + b * ca
        return jnp.stack([ra, rb], axis=-1).reshape(B, T, D)

    outs = []
    mask = jnp.tril(jnp.ones((T, T)))
    for h in range(H):
        q = rope(x @ wq[h])
        k = rope(x @ wk[h])
        v = x @ wv[h]
        s = q @ jnp.swapaxes(k, -1, -2) / math.sqrt(D)
        s = jnp.where(mask == 0, -jnp.inf, s)
        p = jax.nn.softmax(s, axis=-1)
        outs.append(p @ v)
    cat = jnp.concatenate(outs, axis=-1)
    return cat @ params["w_proj"] + params["b_proj"]


# --------------------------------- main --------------------------------------

if __name__ == "__main__":
    # Small, module-consistent shapes: n_embd=64, num_heads=4, head_size=16.
    B, T, C = 2, 16, 64
    H, D = 4, 16

    key = jax.random.PRNGKey(0)
    kx, kq, kk, kv, kw, kb = jax.random.split(key, 6)

    x = jax.random.normal(kx, (B, T, C), dtype=jnp.float32)
    params = {
        "wq": 0.02 * jax.random.normal(kq, (H, C, D), dtype=jnp.float32),
        "wk": 0.02 * jax.random.normal(kk, (H, C, D), dtype=jnp.float32),
        "wv": 0.02 * jax.random.normal(kv, (H, C, D), dtype=jnp.float32),
        "w_proj": 0.02 * jax.random.normal(kw, (H * D, C), dtype=jnp.float32),
        "b_proj": 0.02 * jax.random.normal(kb, (C,), dtype=jnp.float32),
    }

    out = multi_head_attention(x, params)
    jax.block_until_ready(out)

    ref = reference(x, params)
    assert out.shape == (B, T, C), out.shape
    max_err = float(jnp.max(jnp.abs(out - ref)))
    assert jnp.allclose(out, ref, atol=5e-4, rtol=2e-3), max_err

    print("KERNEL_OK")
</pallas_src>

<mosaic_0001>
module attributes {stable_mosaic.version = 11 : i64} {
  func.func @kernel(%arg0: memref<32x64xf32, #tpu.memory_space<vmem>>, %arg1: memref<64x192xf32, #tpu.memory_space<vmem>>, %arg2: memref<64x64xf32, #tpu.memory_space<vmem>>, %arg3: memref<1x64xf32, #tpu.memory_space<vmem>>, %arg4: memref<32x64xf32, #tpu.memory_space<vmem>>, %arg5: memref<32x64xf32, #tpu.memory_space<vmem>>, %arg6: memref<32x32xf32, #tpu.memory_space<vmem>>, %arg7: memref<32x64xf32, #tpu.memory_space<vmem>>) attributes {dimension_semantics = [], scalar_prefetch = 0 : i64, scratch_operands = 0 : i64, tpu.core_type = #tpu.core_type<tc>} {
    %c0 = arith.constant 0 : index
    %c0_0 = arith.constant 0 : index
    %0 = vector.load %arg0[%c0, %c0_0] : memref<32x64xf32, #tpu.memory_space<vmem>>, vector<32x64xf32>
    %c0_1 = arith.constant 0 : index
    %c0_2 = arith.constant 0 : index
    %1 = vector.load %arg1[%c0_1, %c0_2] : memref<64x192xf32, #tpu.memory_space<vmem>>, vector<64x192xf32>
    %cst = arith.constant dense<0.000000e+00> : vector<32x192xf32>
    %2 = tpu.matmul %0, %1, %cst {dimension_numbers = #tpu.dot_dimension_numbers<[1], [0], [0], [1], [0, 0, 1, 1], [], []>} : vector<32x64xf32>, vector<64x192xf32>, vector<32x192xf32> -> vector<32x192xf32>
    %3 = vector.extract_strided_slice %2 {offsets = [0, 0], sizes = [32, 64], strides = [1, 1]} : vector<32x192xf32> to vector<32x64xf32>
    %4 = vector.extract_strided_slice %2 {offsets = [0, 64], sizes = [32, 64], strides = [1, 1]} : vector<32x192xf32> to vector<32x64xf32>
    %5 = vector.extract_strided_slice %2 {offsets = [0, 128], sizes = [32, 64], strides = [1, 1]} : vector<32x192xf32> to vector<32x64xf32>
    %c0_3 = arith.constant 0 : index
    %c0_4 = arith.constant 0 : index
    %6 = vector.load %arg4[%c0_3, %c0_4] : memref<32x64xf32, #tpu.memory_space<vmem>>, vector<32x64xf32>
    %c0_5 = arith.constant 0 : index
    %c0_6 = arith.constant 0 : index
    %7 = vector.load %arg5[%c0_5, %c0_6] : memref<32x64xf32, #tpu.memory_space<vmem>>, vector<32x64xf32>
    %8 = arith.mulf %3, %6 : vector<32x64xf32>
    %c32_i32 = arith.constant 32 : i32
    %9 = tpu.dynamic_rotate %3 by %c32_i32 dim 1 : vector<32x64xf32>, i32 -> vector<32x64xf32>
    %10 = arith.mulf %9, %7 : vector<32x64xf32>
    %11 = arith.addf %8, %10 : vector<32x64xf32>
    %12 = arith.mulf %4, %6 : vector<32x64xf32>
    %c32_i32_7 = arith.constant 32 : i32
    %13 = tpu.dynamic_rotate %4 by %c32_i32_7 dim 1 : vector<32x64xf32>, i32 -> vector<32x64xf32>
    %14 = arith.mulf %13, %7 : vector<32x64xf32>
    %15 = arith.addf %12, %14 : vector<32x64xf32>
    %c0_8 = arith.constant 0 : index
    %c0_9 = arith.constant 0 : index
    %16 = vector.load %arg6[%c0_8, %c0_9] : memref<32x32xf32, #tpu.memory_space<vmem>>, vector<32x32xf32>
    %c0_10 = arith.constant 0 : index
    %c0_11 = arith.constant 0 : index
    %17 = vector.load %arg2[%c0_10, %c0_11] : memref<64x64xf32, #tpu.memory_space<vmem>>, vector<64x64xf32>
    %18 = vector.extract_strided_slice %11 {offsets = [0, 0], sizes = [32, 8], strides = [1, 1]} : vector<32x64xf32> to vector<32x8xf32>
    %19 = vector.extract_strided_slice %11 {offsets = [0, 32], sizes = [32, 8], strides = [1, 1]} : vector<32x64xf32> to vector<32x8xf32>
    %20 = tpu.concatenate %18, %19 in 1 : vector<32x8xf32>, vector<32x8xf32> -> vector<32x16xf32>
    %21 = vector.extract_strided_slice %15 {offsets = [0, 0], sizes = [32, 8], strides = [1, 1]} : vector<32x64xf32> to vector<32x8xf32>
    %22 = vector.extract_strided_slice %15 {offsets = [0, 32], sizes = [32, 8], strides = [1, 1]} : vector<32x64xf32> to vector<32x8xf32>
    %23 = tpu.concatenate %21, %22 in 1 : vector<32x8xf32>, vector<32x8xf32> -> vector<32x16xf32>
    %cst_12 = arith.constant dense<0.000000e+00> : vector<32x32xf32>
    %24 = tpu.matmul %20, %23, %cst_12 {dimension_numbers = #tpu.dot_dimension_numbers<[1], [1], [0], [0], [0, 0, 1, 0], [], []>} : vector<32x16xf32>, vector<32x16xf32>, vector<32x32xf32> -> vector<32x32xf32>
    %25 = arith.addf %24, %16 : vector<32x32xf32>
    %cst_13 = arith.constant dense<0xFF800000> : vector<32xf32>
    %26 = vector.multi_reduction <maximumf>, %25, %cst_13 [1] : vector<32x32xf32> to vector<32xf32>
    %27 = vector.shape_cast %26 : vector<32xf32> to vector<32x1xf32>
    %28 = vector.broadcast %27 : vector<32x1xf32> to vector<32x32xf32>
    %29 = arith.subf %25, %28 : vector<32x32xf32>
    %30 = math.exp %29 : vector<32x32xf32>
    %cst_14 = arith.constant dense<0.000000e+00> : vector<32xf32>
    %31 = vector.multi_reduction <add>, %30, %cst_14 [1] : vector<32x32xf32> to vector<32xf32>
    %32 = vector.shape_cast %31 : vector<32xf32> to vector<32x1xf32>
    %33 = tpu.reciprocal %32 {approx = true} : vector<32x1xf32> -> vector<32x1xf32>
    %34 = vector.broadcast %33 : vector<32x1xf32> to vector<32x32xf32>
    %35 = arith.mulf %30, %34 : vector<32x32xf32>
    %36 = vector.extract_strided_slice %5 {offsets = [0, 0], sizes = [32, 16], strides = [1, 1]} : vector<32x64xf32> to vector<32x16xf32>
    %cst_15 = arith.constant dense<0.000000e+00> : vector<32x16xf32>
    %37 = tpu.matmul %35, %36, %cst_15 {dimension_numbers = #tpu.dot_dimension_numbers<[1], [0], [0], [1], [0, 0, 1, 1], [], []>} : vector<32x32xf32>, vector<32x16xf32>, vector<32x16xf32> -> vector<32x16xf32>
    %38 = vector.extract_strided_slice %11 {offsets = [0, 8], sizes = [32, 8], strides = [1, 1]} : vector<32x64xf32> to vector<32x8xf32>
    %39 = vector.extract_strided_slice %11 {offsets = [0, 40], sizes = [32, 8], strides = [1, 1]} : vector<32x64xf32> to vector<32x8xf32>
    %40 = tpu.concatenate %38, %39 in 1 : vector<32x8xf32>, vector<32x8xf32> -> vector<32x16xf32>
    %41 = vector.extract_strided_slice %15 {offsets = [0, 8], sizes = [32, 8], strides = [1, 1]} : vector<32x64xf32> to vector<32x8xf32>
    %42 = vector.extract_strided_slice %15 {offsets = [0, 40], sizes = [32, 8], strides = [1, 1]} : vector<32x64xf32> to vector<32x8xf32>
    %43 = tpu.concatenate %41, %42 in 1 : vector<32x8xf32>, vector<32x8xf32> -> vector<32x16xf32>
    %cst_16 = arith.constant dense<0.000000e+00> : vector<32x32xf32>
    %44 = tpu.matmul %40, %43, %cst_16 {dimension_numbers = #tpu.dot_dimension_numbers<[1], [1], [0], [0], [0, 0, 1, 0], [], []>} : vector<32x16xf32>, vector<32x16xf32>, vector<32x32xf32> -> vector<32x32xf32>
    %45 = arith.addf %44, %16 : vector<32x32xf32>
    %cst_17 = arith.constant dense<0xFF800000> : vector<32xf32>
    %46 = vector.multi_reduction <maximumf>, %45, %cst_17 [1] : vector<32x32xf32> to vector<32xf32>
    %47 = vector.shape_cast %46 : vector<32xf32> to vector<32x1xf32>
    %48 = vector.broadcast %47 : vector<32x1xf32> to vector<32x32xf32>
    %49 = arith.subf %45, %48 : vector<32x32xf32>
    %50 = math.exp %49 : vector<32x32xf32>
    %cst_18 = arith.constant dense<0.000000e+00> : vector<32xf32>
    %51 = vector.multi_reduction <add>, %50, %cst_18 [1] : vector<32x32xf32> to vector<32xf32>
    %52 = vector.shape_cast %51 : vector<32xf32> to vector<32x1xf32>
    %53 = tpu.reciprocal %52 {approx = true} : vector<32x1xf32> -> vector<32x1xf32>
    %54 = vector.broadcast %53 : vector<32x1xf32> to vector<32x32xf32>
    %55 = arith.mulf %50, %54 : vector<32x32xf32>
    %56 = vector.extract_strided_slice %5 {offsets = [0, 16], sizes = [32, 16], strides = [1, 1]} : vector<32x64xf32> to vector<32x16xf32>
    %cst_19 = arith.constant dense<0.000000e+00> : vector<32x16xf32>
    %57 = tpu.matmul %55, %56, %cst_19 {dimension_numbers = #tpu.dot_dimension_numbers<[1], [0], [0], [1], [0, 0, 1, 1], [], []>} : vector<32x32xf32>, vector<32x16xf32>, vector<32x16xf32> -> vector<32x16xf32>
    %58 = vector.extract_strided_slice %11 {offsets = [0, 16], sizes = [32, 8], strides = [1, 1]} : vector<32x64xf32> to vector<32x8xf32>
    %59 = vector.extract_strided_slice %11 {offsets = [0, 48], sizes = [32, 8], strides = [1, 1]} : vector<32x64xf32> to vector<32x8xf32>
    %60 = tpu.concatenate %58, %59 in 1 : vector<32x8xf32>, vector<32x8xf32> -> vector<32x16xf32>
    %61 = vector.extract_strided_slice %15 {offsets = [0, 16], sizes = [32, 8], strides = [1, 1]} : vector<32x64xf32> to vector<32x8xf32>
    %62 = vector.extract_strided_slice %15 {offsets = [0, 48], sizes = [32, 8], strides = [1, 1]} : vector<32x64xf32> to vector<32x8xf32>
    %63 = tpu.concatenate %61, %62 in 1 : vector<32x8xf32>, vector<32x8xf32> -> vector<32x16xf32>
    %cst_20 = arith.constant dense<0.000000e+00> : vector<32x32xf32>
    %64 = tpu.matmul %60, %63, %cst_20 {dimension_numbers = #tpu.dot_dimension_numbers<[1], [1], [0], [0], [0, 0, 1, 0], [], []>} : vector<32x16xf32>, vector<32x16xf32>, vector<32x32xf32> -> vector<32x32xf32>
    %65 = arith.addf %64, %16 : vector<32x32xf32>
    %cst_21 = arith.constant dense<0xFF800000> : vector<32xf32>
    %66 = vector.multi_reduction <maximumf>, %65, %cst_21 [1] : vector<32x32xf32> to vector<32xf32>
    %67 = vector.shape_cast %66 : vector<32xf32> to vector<32x1xf32>
    %68 = vector.broadcast %67 : vector<32x1xf32> to vector<32x32xf32>
    %69 = arith.subf %65, %68 : vector<32x32xf32>
    %70 = math.exp %69 : vector<32x32xf32>
    %cst_22 = arith.constant dense<0.000000e+00> : vector<32xf32>
    %71 = vector.multi_reduction <add>, %70, %cst_22 [1] : vector<32x32xf32> to vector<32xf32>
    %72 = vector.shape_cast %71 : vector<32xf32> to vector<32x1xf32>
    %73 = tpu.reciprocal %72 {approx = true} : vector<32x1xf32> -> vector<32x1xf32>
    %74 = vector.broadcast %73 : vector<32x1xf32> to vector<32x32xf32>
    %75 = arith.mulf %70, %74 : vector<32x32xf32>
    %76 = vector.extract_strided_slice %5 {offsets = [0, 32], sizes = [32, 16], strides = [1, 1]} : vector<32x64xf32> to vector<32x16xf32>
    %cst_23 = arith.constant dense<0.000000e+00> : vector<32x16xf32>
    %77 = tpu.matmul %75, %76, %cst_23 {dimension_numbers = #tpu.dot_dimension_numbers<[1], [0], [0], [1], [0, 0, 1, 1], [], []>} : vector<32x32xf32>, vector<32x16xf32>, vector<32x16xf32> -> vector<32x16xf32>
    %78 = vector.extract_strided_slice %11 {offsets = [0, 24], sizes = [32, 8], strides = [1, 1]} : vector<32x64xf32> to vector<32x8xf32>
    %79 = vector.extract_strided_slice %11 {offsets = [0, 56], sizes = [32, 8], strides = [1, 1]} : vector<32x64xf32> to vector<32x8xf32>
    %80 = tpu.concatenate %78, %79 in 1 : vector<32x8xf32>, vector<32x8xf32> -> vector<32x16xf32>
    %81 = vector.extract_strided_slice %15 {offsets = [0, 24], sizes = [32, 8], strides = [1, 1]} : vector<32x64xf32> to vector<32x8xf32>
    %82 = vector.extract_strided_slice %15 {offsets = [0, 56], sizes = [32, 8], strides = [1, 1]} : vector<32x64xf32> to vector<32x8xf32>
    %83 = tpu.concatenate %81, %82 in 1 : vector<32x8xf32>, vector<32x8xf32> -> vector<32x16xf32>
    %cst_24 = arith.constant dense<0.000000e+00> : vector<32x32xf32>
    %84 = tpu.matmul %80, %83, %cst_24 {dimension_numbers = #tpu.dot_dimension_numbers<[1], [1], [0], [0], [0, 0, 1, 0], [], []>} : vector<32x16xf32>, vector<32x16xf32>, vector<32x32xf32> -> vector<32x32xf32>
    %85 = arith.addf %84, %16 : vector<32x32xf32>
    %cst_25 = arith.constant dense<0xFF800000> : vector<32xf32>
    %86 = vector.multi_reduction <maximumf>, %85, %cst_25 [1] : vector<32x32xf32> to vector<32xf32>
    %87 = vector.shape_cast %86 : vector<32xf32> to vector<32x1xf32>
    %88 = vector.broadcast %87 : vector<32x1xf32> to vector<32x32xf32>
    %89 = arith.subf %85, %88 : vector<32x32xf32>
    %90 = math.exp %89 : vector<32x32xf32>
    %cst_26 = arith.constant dense<0.000000e+00> : vector<32xf32>
    %91 = vector.multi_reduction <add>, %90, %cst_26 [1] : vector<32x32xf32> to vector<32xf32>
    %92 = vector.shape_cast %91 : vector<32xf32> to vector<32x1xf32>
    %93 = tpu.reciprocal %92 {approx = true} : vector<32x1xf32> -> vector<32x1xf32>
    %94 = vector.broadcast %93 : vector<32x1xf32> to vector<32x32xf32>
    %95 = arith.mulf %90, %94 : vector<32x32xf32>
    %96 = vector.extract_strided_slice %5 {offsets = [0, 48], sizes = [32, 16], strides = [1, 1]} : vector<32x64xf32> to vector<32x16xf32>
    %cst_27 = arith.constant dense<0.000000e+00> : vector<32x16xf32>
    %97 = tpu.matmul %95, %96, %cst_27 {dimension_numbers = #tpu.dot_dimension_numbers<[1], [0], [0], [1], [0, 0, 1, 1], [], []>} : vector<32x32xf32>, vector<32x16xf32>, vector<32x16xf32> -> vector<32x16xf32>
    %98 = tpu.concatenate %37, %57, %77, %97 in 1 : vector<32x16xf32>, vector<32x16xf32>, vector<32x16xf32>, vector<32x16xf32> -> vector<32x64xf32>
    %cst_28 = arith.constant dense<0.000000e+00> : vector<32x64xf32>
    %99 = tpu.matmul %98, %17, %cst_28 {dimension_numbers = #tpu.dot_dimension_numbers<[1], [0], [0], [1], [0, 0, 1, 1], [], []>} : vector<32x64xf32>, vector<64x64xf32>, vector<32x64xf32> -> vector<32x64xf32>
    %c0_29 = arith.constant 0 : index
    %c0_30 = arith.constant 0 : index
    %100 = vector.load %arg3[%c0_29, %c0_30] : memref<1x64xf32, #tpu.memory_space<vmem>>, vector<1x64xf32>
    %101 = vector.broadcast %100 : vector<1x64xf32> to vector<32x64xf32>
    %102 = arith.addf %99, %101 : vector<32x64xf32>
    %c0_31 = arith.constant 0 : index
    %c0_32 = arith.constant 0 : index
    %103 = vector.load %arg7[%c0_31, %c0_32] : memref<32x64xf32, #tpu.memory_space<vmem>>, vector<32x64xf32>
    tpu.vector_store %arg7[%c0_31, %c0_32], %102 {strides = array<i32>} : memref<32x64xf32, #tpu.memory_space<vmem>>, vector<32x64xf32>,
    return
  }
}

</mosaic_0001>

<llo_original>
// kernel: multi_head_attention.1
$region0: #{multi_head_attention.1}
  #allocation0 [shape = 'u32[]', space=smem, size = 0x4, offset = 0x4, fixed_abs, tag = 'smem constant byte address 0x4 - core index']
  #allocation1 [shape = 'u32[144,128]{1,0:T(1,128)}', space=vmem, size = 0x12000, scoped, tag = 'internal scratch']
  %s0 = inlined_call_operand.vmem [shape: f32[32,64], index: 0, kind: input, shape index: {}]
  %s1 = inlined_call_operand.vmem [shape: f32[64,192], index: 1, kind: input, shape index: {}]
  %s2 = inlined_call_operand.vmem [shape: f32[64,64], index: 2, kind: input, shape index: {}]
  %s3 = inlined_call_operand.vmem [shape: f32[1,64], index: 3, kind: input, shape index: {}]
  %s4 = inlined_call_operand.vmem [shape: f32[32,64], index: 4, kind: input, shape index: {}]
  %s5 = inlined_call_operand.vmem [shape: f32[32,64], index: 5, kind: input, shape index: {}]
  %s6 = inlined_call_operand.vmem [shape: f32[32,32], index: 6, kind: input, shape index: {}]
  %s7 = inlined_call_operand.hbm [shape: f32[32,64], index: 7, kind: output, shape index: {}]
  %s8 = sld [smem:[#allocation0]]
  $region38: #{multi_head_attention.1} parent=0
    _
  %s10 = ssub.s32 1, %s8
  %s11 = scalar_select 0, %s10, %s8
  $region1: #{multi_head_attention.1} parent=0
    #allocation2 [shape = 'u8[16384]{0}', space=vmem, size = 0x4000, scoped, tag = 'output window, operand 0, single buffered']
    #allocation3 [shape = 's32[1]{0}', space=sflag, size = 0x4, scoped, tag = 'scoped memory for multi_head_attention.1']
    %12 = vsyncpa [#allocation3], 0
    // Predicated region
    $region2: #{multi_head_attention.1} parent=1 // pred_check
      _
    $region3: #{multi_head_attention.1} parent=1 // pred_check_branch
      %14 = sbr.rel (0) target = $region5
    $region4: #{multi_head_attention.1} parent=1 // pred_region
      _
    $region5: #{multi_head_attention.1} parent=1 // pred_fallthru
      _
    // Predicated region
    $region6: #{multi_head_attention.1} parent=1 // pred_check
      _
    $region7: #{multi_head_attention.1} parent=1 // pred_check_branch
      %16 = sbr.rel (0) target = $region9
    $region8: #{multi_head_attention.1} parent=1 // pred_region
      _
    $region9: #{multi_head_attention.1} parent=1 // pred_fallthru
      _
    // Predicated region
    $region10: #{multi_head_attention.1} parent=1 // pred_check
      _
    $region11: #{multi_head_attention.1} parent=1 // pred_check_branch
      %18 = sbr.rel (0) target = $region13
    $region12: #{multi_head_attention.1} parent=1 // pred_region
      _
    $region13: #{multi_head_attention.1} parent=1 // pred_fallthru
      _
    // Predicated region
    $region14: #{multi_head_attention.1} parent=1 // pred_check
      _
    $region15: #{multi_head_attention.1} parent=1 // pred_check_branch
      %20 = sbr.rel (0) target = $region17
    $region16: #{multi_head_attention.1} parent=1 // pred_region
      _
    $region17: #{multi_head_attention.1} parent=1 // pred_fallthru
      _
    // Predicated region
    $region18: #{multi_head_attention.1} parent=1 // pred_check
      _
    $region19: #{multi_head_attention.1} parent=1 // pred_check_branch
      %22 = sbr.rel (0) target = $region21
    $region20: #{multi_head_attention.1} parent=1 // pred_region
      _
    $region21: #{multi_head_attention.1} parent=1 // pred_fallthru
      _
    // Predicated region
    $region22: #{multi_head_attention.1} parent=1 // pred_check
      _
    $region23: #{multi_head_attention.1} parent=1 // pred_check_branch
      %24 = sbr.rel (0) target = $region25
    $region24: #{multi_head_attention.1} parent=1 // pred_region
      _
    $region25: #{multi_head_attention.1} parent=1 // pred_fallthru
      _
    // Predicated region
    $region26: #{multi_head_attention.1} parent=1 // pred_check
      _
    $region27: #{multi_head_attention.1} parent=1 // pred_check_branch
      %26 = sbr.rel (0) target = $region29
    $region28: #{multi_head_attention.1} parent=1 // pred_region
      _
    $region29: #{multi_head_attention.1} parent=1 // pred_fallthru
      _
    %v27 = vld [vmem:[%s0] sm:$0xff]
    %v28 = vld [vmem:[%s0 + $0x8] sm:$0xff]
    %v29 = vld [vmem:[%s0 + $0x10] sm:$0xff]
    %v30 = vld [vmem:[%s0 + $0x18] sm:$0xff]
    %v31 = vld [vmem:[%s1] sm:$0xff]
    %v32 = vld [vmem:[%s1 + $0x8] sm:$0xff]
    %v33 = vld [vmem:[%s1 + $0x10] sm:$0xff]
    %v34 = vld [vmem:[%s1 + $0x18] sm:$0xff]
    %v35 = vld [vmem:[%s1 + $0x20] sm:$0xff]
    %v36 = vld [vmem:[%s1 + $0x28] sm:$0xff]
    %v37 = vld [vmem:[%s1 + $0x30] sm:$0xff]
    %v38 = vld [vmem:[%s1 + $0x38] sm:$0xff]
    %v39 = vld [vmem:[%s1 + $0x40] sm:$0xff]
    %v40 = vld [vmem:[%s1 + $0x48] sm:$0xff]
    %v41 = vld [vmem:[%s1 + $0x50] sm:$0xff]
    %v42 = vld [vmem:[%s1 + $0x58] sm:$0xff]
    %v43 = vld [vmem:[%s1 + $0x60] sm:$0xff]
    %v44 = vld [vmem:[%s1 + $0x68] sm:$0xff]
    %v45 = vld [vmem:[%s1 + $0x70] sm:$0xff]
    %v46 = vld [vmem:[%s1 + $0x78] sm:$0xff]
    %vm47 = vcmask 523264
    %v49 = vsel %vm47, %v27, 0
    %v52 = vsel %vm47, %v28, 0
    %v55 = vsel %vm47, %v29, 0
    %v58 = vsel %vm47, %v30, 0
    %60 = vmatprep.subr.mxu0 0.0
    %61 = vmatpush1.msra.mxu0 0.0
    %62 = vmatprep.subr.mxu0 0.0
    %63 = vmatpush1.msra.mxu0 0.0
    %64 = vmatprep.subr.mxu0 0.0
    %65 = vmatpush1.msra.mxu0 0.0
    %66 = vmatprep.subr.mxu0 0.0
    %67 = vmatpush1.msra.mxu0 0.0
    %68 = vmatprep.subr.mxu0 0.0
    %69 = vmatpush1.msra.mxu0 0.0
    %70 = vmatprep.subr.mxu0 0.0
    %71 = vmatpush1.msra.mxu0 0.0
    %72 = vmatprep.subr.mxu0 0.0
    %73 = vmatpush1.msra.mxu0 0.0
    %74 = vmatprep.subr.mxu0 0.0
    %75 = vmatpush1.msra.mxu0 0.0
    %76 = vmatprep.subr.mxu0 %v46
    %77 = vmatpush1.msra.mxu0 %v45
    %78 = vmatprep.subr.mxu0 %v44
    %79 = vmatpush1.msra.mxu0 %v43
    %80 = vmatprep.subr.mxu0 %v42
    %81 = vmatpush1.msra.mxu0 %v41
    %82 = vmatprep.subr.mxu0 %v40
    %83 = vmatpush1.msra.mxu0 %v39
    %84 = vmatprep.subr.mxu0 %v38
    %85 = vmatpush1.msra.mxu0 %v37
    %86 = vmatprep.subr.mxu0 %v36
    %87 = vmatpush1.msra.mxu0 %v35
    %88 = vmatprep.subr.mxu0 %v34
    %89 = vmatpush1.msra.mxu0 %v33
    %90 = vmatprep.subr.mxu0 %v32
    %91 = vmatpush1.msra.mxu0 %v31
    %92 = vmatprep.subr.mxu0 0.0
    %93 = vmatpush2.msra.mxu0 0.0
    %94 = vmatprep.subr.mxu0 0.0
    %95 = vmatpush2.msra.mxu0 0.0
    %96 = vmatprep.subr.mxu0 0.0
    %97 = vmatpush2.msra.mxu0 0.0
    %98 = vmatprep.subr.mxu0 0.0
    %99 = vmatpush2.msra.mxu0 0.0
    %100 = vmatprep.subr.mxu0 0.0
    %101 = vmatpush2.msra.mxu0 0.0
    %102 = vmatprep.subr.mxu0 0.0
    %103 = vmatpush2.msra.mxu0 0.0
    %104 = vmatprep.subr.mxu0 0.0
    %105 = vmatpush2.msra.mxu0 0.0
    %106 = vmatprep.subr.mxu0 0.0
    %107 = vmatpush2.msra.mxu0 0.0
    %108 = vmatprep.subr.mxu0 0.0
    %109 = vmatpush2.msra.mxu0 0.0
    %110 = vmatprep.subr.mxu0 0.0
    %111 = vmatpush2.msra.mxu0 0.0
    %112 = vmatprep.subr.mxu0 0.0
    %113 = vmatpush2.msra.mxu0 0.0
    %114 = vmatprep.subr.mxu0 0.0
    %115 = vmatpush2.msra.mxu0 0.0
    %116 = vmatprep.subr.mxu0 0.0
    %117 = vmatpush2.msra.mxu0 0.0
    %118 = vmatprep.subr.mxu0 0.0
    %119 = vmatpush2.msra.mxu0 0.0
    %120 = vmatprep.subr.mxu0 0.0
    %121 = vmatpush2.msra.mxu0 0.0
    %122 = vmatprep.subr.mxu0 0.0
    %123 = vmatpush2.msra.mxu0 0.0
    %124 = vmatprep.mubr.f32.mxu0 0.0
    %125 = vmatmul.mubr.f32.gmra.mxu0 %v49
    %v126 = vpop.f32.mrf.mxu0
    %v127 = vadd.f32 0.0, %v126
    %v128 = vpop.f32.mrf.mxu0
    %v129 = vadd.f32 0.0, %v128
    %130 = vmatprep.mubr.f32.mxu0 0.0
    %131 = vmatmul.mubr.f32.gmra.mxu0 %v52
    %v132 = vpop.f32.mrf.mxu0
    %v133 = vadd.f32 0.0, %v132
    %v134 = vpop.f32.mrf.mxu0
    %v135 = vadd.f32 0.0, %v134
    %136 = vmatprep.mubr.f32.mxu0 0.0
    %137 = vmatmul.mubr.f32.gmra.mxu0 %v55
    %v138 = vpop.f32.mrf.mxu0
    %v139 = vadd.f32 0.0, %v138
    %v140 = vpop.f32.mrf.mxu0
    %v141 = vadd.f32 0.0, %v140
    %142 = vmatprep.mubr.f32.mxu0 0.0
    %143 = vmatmul.mubr.f32.gmra.mxu0 %v58
    %v144 = vpop.f32.mrf.mxu0
    %v145 = vadd.f32 0.0, %v144
    %v146 = vpop.f32.mrf.mxu0
    %v147 = vadd.f32 0.0, %v146
    %148 = vdwg.mxu0
    %v149 = vld [vmem:[%s4] sm:$0xff]
    %v150 = vld [vmem:[%s4 + $0x8] sm:$0xff]
    %v151 = vld [vmem:[%s4 + $0x10] sm:$0xff]
    %v152 = vld [vmem:[%s4 + $0x18] sm:$0xff]
    %v153 = vld [vmem:[%s5] sm:$0xff]
    %v154 = vld [vmem:[%s5 + $0x8] sm:$0xff]
    %v155 = vld [vmem:[%s5 + $0x10] sm:$0xff]
    %v156 = vld [vmem:[%s5 + $0x18] sm:$0xff]
    %v157 = vmul.f32 %v127, %v149
    %v158 = vmul.f32 %v133, %v150
    %v159 = vmul.f32 %v139, %v151
    %v160 = vmul.f32 %v145, %v152
    %vm161 = vcmask 1048064
    %162 = vrot.lane.b32.xlu0 %v127, 64
    %v163 = vpop.permute.xlu0 %162
    %v164 = vsel %vm161, %v163, %v127
    %165 = vrot.lane.b32.xlu0 %v133, 64
    %v166 = vpop.permute.xlu0 %165
    %v167 = vsel %vm161, %v166, %v133
    %168 = vrot.lane.b32.xlu0 %v139, 64
    %v169 = vpop.permute.xlu0 %168
    %v170 = vsel %vm161, %v169, %v139
    %171 = vrot.lane.b32.xlu0 %v145, 64
    %v172 = vpop.permute.xlu0 %171
    %v173 = vsel %vm161, %v172, %v145
    %174 = vrot.lane.b32.xlu0 %v164, 64
    %v175 = vpop.permute.xlu0 %174
    %176 = vrot.lane.b32.xlu0 %v167, 64
    %v177 = vpop.permute.xlu0 %176
    %178 = vrot.lane.b32.xlu0 %v170, 64
    %v179 = vpop.permute.xlu0 %178
    %180 = vrot.lane.b32.xlu0 %v173, 64
    %v181 = vpop.permute.xlu0 %180
    %v182 = vsel %vm161, %v175, %v127
    %v183 = vsel %vm161, %v177, %v133
    %v184 = vsel %vm161, %v179, %v139
    %v185 = vsel %vm161, %v181, %v145
    %190 = vrot.lane.b32.xlu0 %v153, 32
    %v191 = vpop.permute.xlu0 %190
    %192 = vrot.lane.b32.xlu0 %v154, 32
    %v193 = vpop.permute.xlu0 %192
    %194 = vrot.lane.b32.xlu0 %v155, 32
    %v195 = vpop.permute.xlu0 %194
    %196 = vrot.lane.b32.xlu0 %v156, 32
    %v197 = vpop.permute.xlu0 %196
    %v202 = vmul.f32 %v182, %v191
    %v203 = vmul.f32 %v183, %v193
    %v204 = vmul.f32 %v184, %v195
    %v205 = vmul.f32 %v185, %v197
    %210 = vrot.lane.b32.xlu0 %v202, 96
    %v211 = vpop.permute.xlu0 %210
    %212 = vrot.lane.b32.xlu0 %v203, 96
    %v213 = vpop.permute.xlu0 %212
    %214 = vrot.lane.b32.xlu0 %v204, 96
    %v215 = vpop.permute.xlu0 %214
    %216 = vrot.lane.b32.xlu0 %v205, 96
    %v217 = vpop.permute.xlu0 %216
    %v222 = vadd.f32 %v157, %v211
    %v223 = vadd.f32 %v158, %v213
    %v224 = vadd.f32 %v159, %v215
    %v225 = vadd.f32 %v160, %v217
    %230 = vrot.lane.b32.xlu0 %v149, 64
    %v231 = vpop.permute.xlu0 %230
    %232 = vrot.lane.b32.xlu0 %v150, 64
    %v233 = vpop.permute.xlu0 %232
    %234 = vrot.lane.b32.xlu0 %v151, 64
    %v235 = vpop.permute.xlu0 %234
    %236 = vrot.lane.b32.xlu0 %v152, 64
    %v237 = vpop.permute.xlu0 %236
    %v242 = vmul.f32 %v127, %v231
    %v243 = vmul.f32 %v133, %v233
    %v244 = vmul.f32 %v139, %v235
    %v245 = vmul.f32 %v145, %v237
    %250 = vrot.lane.b32.xlu0 %v127, 64
    %v251 = vpop.permute.xlu0 %250
    %252 = vrot.lane.b32.xlu0 %v133, 64
    %v253 = vpop.permute.xlu0 %252
    %254 = vrot.lane.b32.xlu0 %v139, 64
    %v255 = vpop.permute.xlu0 %254
    %256 = vrot.lane.b32.xlu0 %v145, 64
    %v257 = vpop.permute.xlu0 %256
    %262 = vrot.lane.b32.xlu0 %v251, 64
    %v263 = vpop.permute.xlu0 %262
    %v264 = vsel %vm161, %v263, %v251
    %265 = vrot.lane.b32.xlu0 %v253, 64
    %v266 = vpop.permute.xlu0 %265
    %v267 = vsel %vm161, %v266, %v253
    %268 = vrot.lane.b32.xlu0 %v255, 64
    %v269 = vpop.permute.xlu0 %268
    %v270 = vsel %vm161, %v269, %v255
    %271 = vrot.lane.b32.xlu0 %v257, 64
    %v272 = vpop.permute.xlu0 %271
    %v273 = vsel %vm161, %v272, %v257
    %274 = vrot.lane.b32.xlu0 %v264, 64
    %v275 = vpop.permute.xlu0 %274
    %276 = vrot.lane.b32.xlu0 %v267, 64
    %v277 = vpop.permute.xlu0 %276
    %278 = vrot.lane.b32.xlu0 %v270, 64
    %v279 = vpop.permute.xlu0 %278
    %280 = vrot.lane.b32.xlu0 %v273, 64
    %v281 = vpop.permute.xlu0 %280
    %v282 = vsel %vm161, %v275, %v251
    %v283 = vsel %vm161, %v277, %v253
    %v284 = vsel %vm161, %v279, %v255
    %v285 = vsel %vm161, %v281, %v257
    %v286 = vmul.f32 %v282, %v191
    %v287 = vmul.f32 %v283, %v193
    %v288 = vmul.f32 %v284, %v195
    %v289 = vmul.f32 %v285, %v197
    %294 = vrot.lane.b32.xlu0 %v286, 32
    %v295 = vpop.permute.xlu0 %294
    %296 = vrot.lane.b32.xlu0 %v287, 32
    %v297 = vpop.permute.xlu0 %296
    %298 = vrot.lane.b32.xlu0 %v288, 32
    %v299 = vpop.permute.xlu0 %298
    %300 = vrot.lane.b32.xlu0 %v289, 32
    %v301 = vpop.permute.xlu0 %300
    %v306 = vadd.f32 %v242, %v295
    %v307 = vadd.f32 %v243, %v297
    %v308 = vadd.f32 %v244, %v299
    %v309 = vadd.f32 %v245, %v301
    %v310 = vld [vmem:[%s6] sm:$0xff]
    %v311 = vld [vmem:[%s6 + $0x8] sm:$0xff]
    %v312 = vld [vmem:[%s6 + $0x10] sm:$0xff]
    %v313 = vld [vmem:[%s6 + $0x18] sm:$0xff]
    %v314 = vld [vmem:[%s2] sm:$0xff]
    %v315 = vld [vmem:[%s2 + $0x8] sm:$0xff]
    %v316 = vld [vmem:[%s2 + $0x10] sm:$0xff]
    %v317 = vld [vmem:[%s2 + $0x18] sm:$0xff]
    %v318 = vld [vmem:[%s2 + $0x20] sm:$0xff]
    %v319 = vld [vmem:[%s2 + $0x28] sm:$0xff]
    %v320 = vld [vmem:[%s2 + $0x30] sm:$0xff]
    %v321 = vld [vmem:[%s2 + $0x38] sm:$0xff]
    %326 = vrot.lane.b32.xlu0 %v222, 104
    %v327 = vpop.permute.xlu0 %326
    %328 = vrot.lane.b32.xlu0 %v223, 104
    %v329 = vpop.permute.xlu0 %328
    %330 = vrot.lane.b32.xlu0 %v224, 104
    %v331 = vpop.permute.xlu0 %330
    %332 = vrot.lane.b32.xlu0 %v225, 104
    %v333 = vpop.permute.xlu0 %332
    %vm338 = vcmask 64512
    %v339 = vsel %vm338, %v222, %v327
    %v340 = vsel %vm338, %v223, %v329
    %v341 = vsel %vm338, %v224, %v331
    %v342 = vsel %vm338, %v225, %v333
    %347 = vrot.lane.b32.xlu0 %v306, 64
    %v348 = vpop.permute.xlu0 %347
    %349 = vrot.lane.b32.xlu0 %v307, 64
    %v350 = vpop.permute.xlu0 %349
    %351 = vrot.lane.b32.xlu0 %v308, 64
    %v352 = vpop.permute.xlu0 %351
    %353 = vrot.lane.b32.xlu0 %v309, 64
    %v354 = vpop.permute.xlu0 %353
    %359 = vrot.lane.b32.xlu0 %v306, 40
    %v360 = vpop.permute.xlu0 %359
    %361 = vrot.lane.b32.xlu0 %v307, 40
    %v362 = vpop.permute.xlu0 %361
    %363 = vrot.lane.b32.xlu0 %v308, 40
    %v364 = vpop.permute.xlu0 %363
    %365 = vrot.lane.b32.xlu0 %v309, 40
    %v366 = vpop.permute.xlu0 %365
    %v371 = vsel %vm338, %v348, %v360
    %v372 = vsel %vm338, %v350, %v362
    %v373 = vsel %vm338, %v352, %v364
    %v374 = vsel %vm338, %v354, %v366
    %vm375 = vcmask 130048
    %v377 = vsel %vm375, %v339, 0
    %v380 = vsel %vm375, %v340, 0
    %v383 = vsel %vm375, %v341, 0
    %v386 = vsel %vm375, %v342, 0
    %v389 = vsel %vm375, %v371, 0
    %v392 = vsel %vm375, %v372, 0
    %v395 = vsel %vm375, %v373, 0
    %v398 = vsel %vm375, %v374, 0
    %400 = vmatprep.subr.mxu0 0.0
    %401 = vmatpush1.xpose.msra.mxu0 0.0
    %402 = vmatprep.subr.mxu0 0.0
    %403 = vmatpush1.xpose.msra.mxu0 0.0
    %404 = vmatprep.subr.mxu0 0.0
    %405 = vmatpush1.xpose.msra.mxu0 0.0
    %406 = vmatprep.subr.mxu0 0.0
    %407 = vmatpush1.xpose.msra.mxu0 0.0
    %408 = vmatprep.subr.mxu0 0.0
    %409 = vmatpush1.xpose.msra.mxu0 0.0
    %410 = vmatprep.subr.mxu0 0.0
    %411 = vmatpush1.xpose.msra.mxu0 0.0
    %412 = vmatprep.subr.mxu0 0.0
    %413 = vmatpush1.xpose.msra.mxu0 0.0
    %414 = vmatprep.subr.mxu0 0.0
    %415 = vmatpush1.xpose.msra.mxu0 0.0
    %416 = vmatprep.subr.mxu0 0.0
    %417 = vmatpush1.xpose.msra.mxu0 0.0
    %418 = vmatprep.subr.mxu0 0.0
    %419 = vmatpush1.xpose.msra.mxu0 0.0
    %420 = vmatprep.subr.mxu0 0.0
    %421 = vmatpush1.xpose.msra.mxu0 0.0
    %422 = vmatprep.subr.mxu0 0.0
    %423 = vmatpush1.xpose.msra.mxu0 0.0
    %424 = vmatprep.subr.mxu0 0.0
    %425 = vmatpush1.xpose.msra.mxu0 %v398
    %426 = vmatprep.subr.mxu0 0.0
    %427 = vmatpush1.xpose.msra.mxu0 %v395
    %428 = vmatprep.subr.mxu0 0.0
    %429 = vmatpush1.xpose.msra.mxu0 %v392
    %430 = vmatprep.subr.mxu0 0.0
    %431 = vmatpush1.xpose.msra.mxu0 %v389
    %432 = vmatprep.subr.mxu0 0.0
    %433 = vmatpush2.xpose.msra.mxu0 0.0
    %434 = vmatprep.subr.mxu0 0.0
    %435 = vmatpush2.xpose.msra.mxu0 0.0
    %436 = vmatprep.subr.mxu0 0.0
    %437 = vmatpush2.xpose.msra.mxu0 0.0
    %438 = vmatprep.subr.mxu0 0.0
    %439 = vmatpush2.xpose.msra.mxu0 0.0
    %440 = vmatprep.subr.mxu0 0.0
    %441 = vmatpush2.xpose.msra.mxu0 0.0
    %442 = vmatprep.subr.mxu0 0.0
    %443 = vmatpush2.xpose.msra.mxu0 0.0
    %444 = vmatprep.subr.mxu0 0.0
    %445 = vmatpush2.xpose.msra.mxu0 0.0
    %446 = vmatprep.subr.mxu0 0.0
    %447 = vmatpush2.xpose.msra.mxu0 0.0
    %448 = vmatprep.subr.mxu0 0.0
    %449 = vmatpush2.xpose.msra.mxu0 0.0
    %450 = vmatprep.subr.mxu0 0.0
    %451 = vmatpush2.xpose.msra.mxu0 0.0
    %452 = vmatprep.subr.mxu0 0.0
    %453 = vmatpush2.xpose.msra.mxu0 0.0
    %454 = vmatprep.subr.mxu0 0.0
    %455 = vmatpush2.xpose.msra.mxu0 0.0
    %456 = vmatprep.subr.mxu0 0.0
    %457 = vmatpush2.xpose.msra.mxu0 0.0
    %458 = vmatprep.subr.mxu0 0.0
    %459 = vmatpush2.xpose.msra.mxu0 0.0
    %460 = vmatprep.subr.mxu0 0.0
    %461 = vmatpush2.xpose.msra.mxu0 0.0
    %462 = vmatprep.subr.mxu0 0.0
    %463 = vmatpush2.xpose.msra.mxu0 0.0
    %464 = vmatprep.mubr.f32.mxu0 0.0
    %465 = vmatmul.mubr.f32.gmra.mxu0 %v377
    %v466 = vpop.f32.mrf.mxu0
    %v467 = vadd.f32 %v310, %v466
    %v468 = vpop.f32.mrf.mxu0
    %469 = vmatprep.mubr.f32.mxu0 0.0
    %470 = vmatmul.mubr.f32.gmra.mxu0 %v380
    %v471 = vpop.f32.mrf.mxu0
    %v472 = vadd.f32 %v311, %v471
    %v473 = vpop.f32.mrf.mxu0
    %474 = vmatprep.mubr.f32.mxu0 0.0
    %475 = vmatmul.mubr.f32.gmra.mxu0 %v383
    %v476 = vpop.f32.mrf.mxu0
    %v477 = vadd.f32 %v312, %v476
    %v478 = vpop.f32.mrf.mxu0
    %479 = vmatprep.mubr.f32.mxu0 0.0
    %480 = vmatmul.mubr.f32.gmra.mxu0 %v386
    %v481 = vpop.f32.mrf.mxu0
    %v482 = vadd.f32 %v313, %v481
    %v483 = vpop.f32.mrf.mxu0
    %484 = vdwg.mxu0
    %vm485 = vcmask 261120
    %v486 = vsel %vm485, %v467, -inf
    %487 = vmax.xlane.f32.xlu0 %v486
    %v488 = vpop.xlane.xlu0 %487
    %v489 = vsel %vm485, %v472, -inf
    %490 = vmax.xlane.f32.xlu0 %v489
    %v491 = vpop.xlane.xlu0 %490
    %v492 = vsel %vm485, %v477, -inf
    %493 = vmax.xlane.f32.xlu0 %v492
    %v494 = vpop.xlane.xlu0 %493
    %v495 = vsel %vm485, %v482, -inf
    %496 = vmax.xlane.f32.xlu0 %v495
    %v497 = vpop.xlane.xlu0 %496
    %v498 = vsub.f32 %v467, %v488
    %v499 = vsub.f32 %v472, %v491
    %v500 = vsub.f32 %v477, %v494
    %v501 = vsub.f32 %v482, %v497
    %v502 = vmul.f32 %v498, 1.442695
    %v503 = vpow.pop %v502
    %v504 = vmul.f32 %v499, 1.442695
    %v505 = vpow.pop %v504
    %v506 = vmul.f32 %v500, 1.442695
    %v507 = vpow.pop %v506
    %v508 = vmul.f32 %v501, 1.442695
    %v509 = vpow.pop %v508
    %v510 = vsel %vm485, %v503, 0.0
    %511 = vadd.xlane.f32.xlu0 %v510
    %v512 = vpop.xlane.xlu0 %511
    %v513 = vsel %vm485, %v505, 0.0
    %514 = vadd.xlane.f32.xlu0 %v513
    %v515 = vpop.xlane.xlu0 %514
    %v516 = vsel %vm485, %v507, 0.0
    %517 = vadd.xlane.f32.xlu0 %v516
    %v518 = vpop.xlane.xlu0 %517
    %v519 = vsel %vm485, %v509, 0.0
    %520 = vadd.xlane.f32.xlu0 %v519
    %v521 = vpop.xlane.xlu0 %520
    %v522 = vrcp.pop %v512
    %v523 = vrcp.pop %v515
    %v524 = vrcp.pop %v518
    %v525 = vrcp.pop %v521
    %v526 = vmul.f32 %v503, %v522
    %v527 = vmul.f32 %v505, %v523
    %v528 = vmul.f32 %v507, %v524
    %v529 = vmul.f32 %v509, %v525
    %v531 = vsel %vm485, %v526, 0
    %v534 = vsel %vm485, %v527, 0
    %v537 = vsel %vm485, %v528, 0
    %v540 = vsel %vm485, %v529, 0
    %542 = vmatprep.subr.mxu0 0.0
    %543 = vmatpush1.msra.mxu0 0.0
    %544 = vmatprep.subr.mxu0 0.0
    %545 = vmatpush1.msra.mxu0 0.0
    %546 = vmatprep.subr.mxu0 0.0
    %547 = vmatpush1.msra.mxu0 0.0
    %548 = vmatprep.subr.mxu0 0.0
    %549 = vmatpush1.msra.mxu0 0.0
    %550 = vmatprep.subr.mxu0 0.0
    %551 = vmatpush1.msra.mxu0 0.0
    %552 = vmatprep.subr.mxu0 0.0
    %553 = vmatpush1.msra.mxu0 0.0
    %554 = vmatprep.subr.mxu0 0.0
    %555 = vmatpush1.msra.mxu0 0.0
    %556 = vmatprep.subr.mxu0 0.0
    %557 = vmatpush1.msra.mxu0 0.0
    %558 = vmatprep.subr.mxu0 0.0
    %559 = vmatpush1.msra.mxu0 0.0
    %560 = vmatprep.subr.mxu0 0.0
    %561 = vmatpush1.msra.mxu0 0.0
    %562 = vmatprep.subr.mxu0 0.0
    %563 = vmatpush1.msra.mxu0 0.0
    %564 = vmatprep.subr.mxu0 0.0
    %565 = vmatpush1.msra.mxu0 0.0
    %566 = vmatprep.subr.mxu0 0.0
    %567 = vmatpush1.msra.mxu0 %v147
    %568 = vmatprep.subr.mxu0 0.0
    %569 = vmatpush1.msra.mxu0 %v141
    %570 = vmatprep.subr.mxu0 0.0
    %571 = vmatpush1.msra.mxu0 %v135
    %572 = vmatprep.subr.mxu0 0.0
    %573 = vmatpush1.msra.mxu0 %v129
    %574 = vmatprep.subr.mxu0 0.0
    %575 = vmatpush2.msra.mxu0 0.0
    %576 = vmatprep.subr.mxu0 0.0
    %577 = vmatpush2.msra.mxu0 0.0
    %578 = vmatprep.subr.mxu0 0.0
    %579 = vmatpush2.msra.mxu0 0.0
    %580 = vmatprep.subr.mxu0 0.0
    %581 = vmatpush2.msra.mxu0 0.0
    %582 = vmatprep.subr.mxu0 0.0
    %583 = vmatpush2.msra.mxu0 0.0
    %584 = vmatprep.subr.mxu0 0.0
    %585 = vmatpush2.msra.mxu0 0.0
    %586 = vmatprep.subr.mxu0 0.0
    %587 = vmatpush2.msra.mxu0 0.0
    %588 = vmatprep.subr.mxu0 0.0
    %589 = vmatpush2.msra.mxu0 0.0
    %590 = vmatprep.subr.mxu0 0.0
    %591 = vmatpush2.msra.mxu0 0.0
    %592 = vmatprep.subr.mxu0 0.0
    %593 = vmatpush2.msra.mxu0 0.0
    %594 = vmatprep.subr.mxu0 0.0
    %595 = vmatpush2.msra.mxu0 0.0
    %596 = vmatprep.subr.mxu0 0.0
    %597 = vmatpush2.msra.mxu0 0.0
    %598 = vmatprep.subr.mxu0 0.0
    %599 = vmatpush2.msra.mxu0 0.0
    %600 = vmatprep.subr.mxu0 0.0
    %601 = vmatpush2.msra.mxu0 0.0
    %602 = vmatprep.subr.mxu0 0.0
    %603 = vmatpush2.msra.mxu0 0.0
    %604 = vmatprep.subr.mxu0 0.0
    %605 = vmatpush2.msra.mxu0 0.0
    %606 = vmatprep.mubr.f32.mxu0 0.0
    %607 = vmatmul.mubr.f32.gmra.mxu0 %v531
    %v608 = vpop.f32.mrf.mxu0
    %v609 = vadd.f32 0.0, %v608
    %v610 = vpop.f32.mrf.mxu0
    %611 = vmatprep.mubr.f32.mxu0 0.0
    %612 = vmatmul.mubr.f32.gmra.mxu0 %v534
    %v613 = vpop.f32.mrf.mxu0
    %v614 = vadd.f32 0.0, %v613
    %v615 = vpop.f32.mrf.mxu0
    %616 = vmatprep.mubr.f32.mxu0 0.0
    %617 = vmatmul.mubr.f32.gmra.mxu0 %v537
    %v618 = vpop.f32.mrf.mxu0
    %v619 = vadd.f32 0.0, %v618
    %v620 = vpop.f32.mrf.mxu0
    %621 = vmatprep.mubr.f32.mxu0 0.0
    %622 = vmatmul.mubr.f32.gmra.mxu0 %v540
    %v623 = vpop.f32.mrf.mxu0
    %v624 = vadd.f32 0.0, %v623
    %v625 = vpop.f32.mrf.mxu0
    %626 = vdwg.mxu0
    %627 = vrot.lane.b32.xlu0 %v222, 120
    %v628 = vpop.permute.xlu0 %627
    %629 = vrot.lane.b32.xlu0 %v223, 120
    %v630 = vpop.permute.xlu0 %629
    %631 = vrot.lane.b32.xlu0 %v224, 120
    %v632 = vpop.permute.xlu0 %631
    %633 = vrot.lane.b32.xlu0 %v225, 120
    %v634 = vpop.permute.xlu0 %633
    %639 = vrot.lane.b32.xlu0 %v222, 96
    %v640 = vpop.permute.xlu0 %639
    %641 = vrot.lane.b32.xlu0 %v223, 96
    %v642 = vpop.permute.xlu0 %641
    %643 = vrot.lane.b32.xlu0 %v224, 96
    %v644 = vpop.permute.xlu0 %643
    %645 = vrot.lane.b32.xlu0 %v225, 96
    %v646 = vpop.permute.xlu0 %645
    %v651 = vsel %vm338, %v628, %v640
    %v652 = vsel %vm338, %v630, %v642
    %v653 = vsel %vm338, %v632, %v644
    %v654 = vsel %vm338, %v634, %v646
    %655 = vrot.lane.b32.xlu0 %v306, 56
    %v656 = vpop.permute.xlu0 %655
    %657 = vrot.lane.b32.xlu0 %v307, 56
    %v658 = vpop.permute.xlu0 %657
    %659 = vrot.lane.b32.xlu0 %v308, 56
    %v660 = vpop.permute.xlu0 %659
    %661 = vrot.lane.b32.xlu0 %v309, 56
    %v662 = vpop.permute.xlu0 %661
    %667 = vrot.lane.b32.xlu0 %v306, 32
    %v668 = vpop.permute.xlu0 %667
    %669 = vrot.lane.b32.xlu0 %v307, 32
    %v670 = vpop.permute.xlu0 %669
    %671 = vrot.lane.b32.xlu0 %v308, 32
    %v672 = vpop.permute.xlu0 %671
    %673 = vrot.lane.b32.xlu0 %v309, 32
    %v674 = vpop.permute.xlu0 %673
    %v679 = vsel %vm338, %v656, %v668
    %v680 = vsel %vm338, %v658, %v670
    %v681 = vsel %vm338, %v660, %v672
    %v682 = vsel %vm338, %v662, %v674
    %v684 = vsel %vm375, %v651, 0
    %v687 = vsel %vm375, %v652, 0
    %v690 = vsel %vm375, %v653, 0
    %v693 = vsel %vm375, %v654, 0
    %v696 = vsel %vm375, %v679, 0
    %v699 = vsel %vm375, %v680, 0
    %v702 = vsel %vm375, %v681, 0
    %v705 = vsel %vm375, %v682, 0
    %707 = vmatprep.subr.mxu0 0.0
    %708 = vmatpush1.xpose.msra.mxu0 0.0
    %709 = vmatprep.subr.mxu0 0.0
    %710 = vmatpush1.xpose.msra.mxu0 0.0
    %711 = vmatprep.subr.mxu0 0.0
    %712 = vmatpush1.xpose.msra.mxu0 0.0
    %713 = vmatprep.subr.mxu0 0.0
    %714 = vmatpush1.xpose.msra.mxu0 0.0
    %715 = vmatprep.subr.mxu0 0.0
    %716 = vmatpush1.xpose.msra.mxu0 0.0
    %717 = vmatprep.subr.mxu0 0.0
    %718 = vmatpush1.xpose.msra.mxu0 0.0
    %719 = vmatprep.subr.mxu0 0.0
    %720 = vmatpush1.xpose.msra.mxu0 0.0
    %721 = vmatprep.subr.mxu0 0.0
    %722 = vmatpush1.xpose.msra.mxu0 0.0
    %723 = vmatprep.subr.mxu0 0.0
    %724 = vmatpush1.xpose.msra.mxu0 0.0
    %725 = vmatprep.subr.mxu0 0.0
    %726 = vmatpush1.xpose.msra.mxu0 0.0
    %727 = vmatprep.subr.mxu0 0.0
    %728 = vmatpush1.xpose.msra.mxu0 0.0
    %729 = vmatprep.subr.mxu0 0.0
    %730 = vmatpush1.xpose.msra.mxu0 0.0
    %731 = vmatprep.subr.mxu0 0.0
    %732 = vmatpush1.xpose.msra.mxu0 %v705
    %733 = vmatprep.subr.mxu0 0.0
    %734 = vmatpush1.xpose.msra.mxu0 %v702
    %735 = vmatprep.subr.mxu0 0.0
    %736 = vmatpush1.xpose.msra.mxu0 %v699
    %737 = vmatprep.subr.mxu0 0.0
    %738 = vmatpush1.xpose.msra.mxu0 %v696
    %739 = vmatprep.subr.mxu0 0.0
    %740 = vmatpush2.xpose.msra.mxu0 0.0
    %741 = vmatprep.subr.mxu0 0.0
    %742 = vmatpush2.xpose.msra.mxu0 0.0
    %743 = vmatprep.subr.mxu0 0.0
    %744 = vmatpush2.xpose.msra.mxu0 0.0
    %745 = vmatprep.subr.mxu0 0.0
    %746 = vmatpush2.xpose.msra.mxu0 0.0
    %747 = vmatprep.subr.mxu0 0.0
    %748 = vmatpush2.xpose.msra.mxu0 0.0
    %749 = vmatprep.subr.mxu0 0.0
    %750 = vmatpush2.xpose.msra.mxu0 0.0
    %751 = vmatprep.subr.mxu0 0.0
    %752 = vmatpush2.xpose.msra.mxu0 0.0
    %753 = vmatprep.subr.mxu0 0.0
    %754 = vmatpush2.xpose.msra.mxu0 0.0
    %755 = vmatprep.subr.mxu0 0.0
    %756 = vmatpush2.xpose.msra.mxu0 0.0
    %757 = vmatprep.subr.mxu0 0.0
    %758 = vmatpush2.xpose.msra.mxu0 0.0
    %759 = vmatprep.subr.mxu0 0.0
    %760 = vmatpush2.xpose.msra.mxu0 0.0
    %761 = vmatprep.subr.mxu0 0.0
    %762 = vmatpush2.xpose.msra.mxu0 0.0
    %763 = vmatprep.subr.mxu0 0.0
    %764 = vmatpush2.xpose.msra.mxu0 0.0
    %765 = vmatprep.subr.mxu0 0.0
    %766 = vmatpush2.xpose.msra.mxu0 0.0
    %767 = vmatprep.subr.mxu0 0.0
    %768 = vmatpush2.xpose.msra.mxu0 0.0
    %769 = vmatprep.subr.mxu0 0.0
    %770 = vmatpush2.xpose.msra.mxu0 0.0
    %771 = vmatprep.mubr.f32.mxu0 0.0
    %772 = vmatmul.mubr.f32.gmra.mxu0 %v684
    %v773 = vpop.f32.mrf.mxu0
    %v774 = vadd.f32 %v310, %v773
    %v775 = vpop.f32.mrf.mxu0
    %776 = vmatprep.mubr.f32.mxu0 0.0
    %777 = vmatmul.mubr.f32.gmra.mxu0 %v687
    %v778 = vpop.f32.mrf.mxu0
    %v779 = vadd.f32 %v311, %v778
    %v780 = vpop.f32.mrf.mxu0
    %781 = vmatprep.mubr.f32.mxu0 0.0
    %782 = vmatmul.mubr.f32.gmra.mxu0 %v690
    %v783 = vpop.f32.mrf.mxu0
    %v784 = vadd.f32 %v312, %v783
    %v785 = vpop.f32.mrf.mxu0
    %786 = vmatprep.mubr.f32.mxu0 0.0
    %787 = vmatmul.mubr.f32.gmra.mxu0 %v693
    %v788 = vpop.f32.mrf.mxu0
    %v789 = vadd.f32 %v313, %v788
    %v790 = vpop.f32.mrf.mxu0
    %791 = vdwg.mxu0
    %v792 = vsel %vm485, %v774, -inf
    %793 = vmax.xlane.f32.xlu0 %v792
    %v794 = vpop.xlane.xlu0 %793
    %v795 = vsel %vm485, %v779, -inf
    %796 = vmax.xlane.f32.xlu0 %v795
    %v797 = vpop.xlane.xlu0 %796
    %v798 = vsel %vm485, %v784, -inf
    %799 = vmax.xlane.f32.xlu0 %v798
    %v800 = vpop.xlane.xlu0 %799
    %v801 = vsel %vm485, %v789, -inf
    %802 = vmax.xlane.f32.xlu0 %v801
    %v803 = vpop.xlane.xlu0 %802
    %v804 = vsub.f32 %v774, %v794
    %v805 = vsub.f32 %v779, %v797
    %v806 = vsub.f32 %v784, %v800
    %v807 = vsub.f32 %v789, %v803
    %v808 = vmul.f32 %v804, 1.442695
    %v809 = vpow.pop %v808
    %v810 = vmul.f32 %v805, 1.442695
    %v811 = vpow.pop %v810
    %v812 = vmul.f32 %v806, 1.442695
    %v813 = vpow.pop %v812
    %v814 = vmul.f32 %v807, 1.442695
    %v815 = vpow.pop %v814
    %v816 = vsel %vm485, %v809, 0.0
    %817 = vadd.xlane.f32.xlu0 %v816
    %v818 = vpop.xlane.xlu0 %817
    %v819 = vsel %vm485, %v811, 0.0
    %820 = vadd.xlane.f32.xlu0 %v819
    %v821 = vpop.xlane.xlu0 %820
    %v822 = vsel %vm485, %v813, 0.0
    %823 = vadd.xlane.f32.xlu0 %v822
    %v824 = vpop.xlane.xlu0 %823
    %v825 = vsel %vm485, %v815, 0.0
    %826 = vadd.xlane.f32.xlu0 %v825
    %v827 = vpop.xlane.xlu0 %826
    %v828 = vrcp.pop %v818
    %v829 = vrcp.pop %v821
    %v830 = vrcp.pop %v824
    %v831 = vrcp.pop %v827
    %v832 = vmul.f32 %v809, %v828
    %v833 = vmul.f32 %v811, %v829
    %v834 = vmul.f32 %v813, %v830
    %v835 = vmul.f32 %v815, %v831
    %840 = vrot.lane.b32.xlu0 %v129, 112
    %v841 = vpop.permute.xlu0 %840
    %842 = vrot.lane.b32.xlu0 %v135, 112
    %v843 = vpop.permute.xlu0 %842
    %844 = vrot.lane.b32.xlu0 %v141, 112
    %v845 = vpop.permute.xlu0 %844
    %846 = vrot.lane.b32.xlu0 %v147, 112
    %v847 = vpop.permute.xlu0 %846
    %v853 = vsel %vm485, %v832, 0
    %v856 = vsel %vm485, %v833, 0
    %v859 = vsel %vm485, %v834, 0
    %v862 = vsel %vm485, %v835, 0
    %864 = vmatprep.subr.mxu0 0.0
    %865 = vmatpush1.msra.mxu0 0.0
    %866 = vmatprep.subr.mxu0 0.0
    %867 = vmatpush1.msra.mxu0 0.0
    %868 = vmatprep.subr.mxu0 0.0
    %869 = vmatpush1.msra.mxu0 0.0
    %870 = vmatprep.subr.mxu0 0.0
    %871 = vmatpush1.msra.mxu0 0.0
    %872 = vmatprep.subr.mxu0 0.0
    %873 = vmatpush1.msra.mxu0 0.0
    %874 = vmatprep.subr.mxu0 0.0
    %875 = vmatpush1.msra.mxu0 0.0
    %876 = vmatprep.subr.mxu0 0.0
    %877 = vmatpush1.msra.mxu0 0.0
    %878 = vmatprep.subr.mxu0 0.0
    %879 = vmatpush1.msra.mxu0 0.0
    %880 = vmatprep.subr.mxu0 0.0
    %881 = vmatpush1.msra.mxu0 0.0
    %882 = vmatprep.subr.mxu0 0.0
    %883 = vmatpush1.msra.mxu0 0.0
    %884 = vmatprep.subr.mxu0 0.0
    %885 = vmatpush1.msra.mxu0 0.0
    %886 = vmatprep.subr.mxu0 0.0
    %887 = vmatpush1.msra.mxu0 0.0
    %888 = vmatprep.subr.mxu0 0.0
    %889 = vmatpush1.msra.mxu0 %v847
    %890 = vmatprep.subr.mxu0 0.0
    %891 = vmatpush1.msra.mxu0 %v845
    %892 = vmatprep.subr.mxu0 0.0
    %893 = vmatpush1.msra.mxu0 %v843
    %894 = vmatprep.subr.mxu0 0.0
    %895 = vmatpush1.msra.mxu0 %v841
    %896 = vmatprep.subr.mxu0 0.0
    %897 = vmatpush2.msra.mxu0 0.0
    %898 = vmatprep.subr.mxu0 0.0
    %899 = vmatpush2.msra.mxu0 0.0
    %900 = vmatprep.subr.mxu0 0.0
    %901 = vmatpush2.msra.mxu0 0.0
    %902 = vmatprep.subr.mxu0 0.0
    %903 = vmatpush2.msra.mxu0 0.0
    %904 = vmatprep.subr.mxu0 0.0
    %905 = vmatpush2.msra.mxu0 0.0
    %906 = vmatprep.subr.mxu0 0.0
    %907 = vmatpush2.msra.mxu0 0.0
    %908 = vmatprep.subr.mxu0 0.0
    %909 = vmatpush2.msra.mxu0 0.0
    %910 = vmatprep.subr.mxu0 0.0
    %911 = vmatpush2.msra.mxu0 0.0
    %912 = vmatprep.subr.mxu0 0.0
    %913 = vmatpush2.msra.mxu0 0.0
    %914 = vmatprep.subr.mxu0 0.0
    %915 = vmatpush2.msra.mxu0 0.0
    %916 = vmatprep.subr.mxu0 0.0
    %917 = vmatpush2.msra.mxu0 0.0
    %918 = vmatprep.subr.mxu0 0.0
    %919 = vmatpush2.msra.mxu0 0.0
    %920 = vmatprep.subr.mxu0 0.0
    %921 = vmatpush2.msra.mxu0 0.0
    %922 = vmatprep.subr.mxu0 0.0
    %923 = vmatpush2.msra.mxu0 0.0
    %924 = vmatprep.subr.mxu0 0.0
    %925 = vmatpush2.msra.mxu0 0.0
    %926 = vmatprep.subr.mxu0 0.0
    %927 = vmatpush2.msra.mxu0 0.0
    %928 = vmatprep.mubr.f32.mxu0 0.0
    %929 = vmatmul.mubr.f32.gmra.mxu0 %v853
    %v930 = vpop.f32.mrf.mxu0
    %v931 = vadd.f32 0.0, %v930
    %v932 = vpop.f32.mrf.mxu0
    %933 = vmatprep.mubr.f32.mxu0 0.0
    %934 = vmatmul.mubr.f32.gmra.mxu0 %v856
    %v935 = vpop.f32.mrf.mxu0
    %v936 = vadd.f32 0.0, %v935
    %v937 = vpop.f32.mrf.mxu0
    %938 = vmatprep.mubr.f32.mxu0 0.0
    %939 = vmatmul.mubr.f32.gmra.mxu0 %v859
    %v940 = vpop.f32.mrf.mxu0
    %v941 = vadd.f32 0.0, %v940
    %v942 = vpop.f32.mrf.mxu0
    %943 = vmatprep.mubr.f32.mxu0 0.0
    %944 = vmatmul.mubr.f32.gmra.mxu0 %v862
    %v945 = vpop.f32.mrf.mxu0
    %v946 = vadd.f32 0.0, %v945
    %v947 = vpop.f32.mrf.mxu0
    %948 = vdwg.mxu0
    %949 = vrot.lane.b32.xlu0 %v222, 112
    %v950 = vpop.permute.xlu0 %949
    %951 = vrot.lane.b32.xlu0 %v223, 112
    %v952 = vpop.permute.xlu0 %951
    %953 = vrot.lane.b32.xlu0 %v224, 112
    %v954 = vpop.permute.xlu0 %953
    %955 = vrot.lane.b32.xlu0 %v225, 112
    %v956 = vpop.permute.xlu0 %955
    %961 = vrot.lane.b32.xlu0 %v222, 88
    %v962 = vpop.permute.xlu0 %961
    %963 = vrot.lane.b32.xlu0 %v223, 88
    %v964 = vpop.permute.xlu0 %963
    %965 = vrot.lane.b32.xlu0 %v224, 88
    %v966 = vpop.permute.xlu0 %965
    %967 = vrot.lane.b32.xlu0 %v225, 88
    %v968 = vpop.permute.xlu0 %967
    %v973 = vsel %vm338, %v950, %v962
    %v974 = vsel %vm338, %v952, %v964
    %v975 = vsel %vm338, %v954, %v966
    %v976 = vsel %vm338, %v956, %v968
    %977 = vrot.lane.b32.xlu0 %v306, 48
    %v978 = vpop.permute.xlu0 %977
    %979 = vrot.lane.b32.xlu0 %v307, 48
    %v980 = vpop.permute.xlu0 %979
    %981 = vrot.lane.b32.xlu0 %v308, 48
    %v982 = vpop.permute.xlu0 %981
    %983 = vrot.lane.b32.xlu0 %v309, 48
    %v984 = vpop.permute.xlu0 %983
    %989 = vrot.lane.b32.xlu0 %v306, 24
    %v990 = vpop.permute.xlu0 %989
    %991 = vrot.lane.b32.xlu0 %v307, 24
    %v992 = vpop.permute.xlu0 %991
    %993 = vrot.lane.b32.xlu0 %v308, 24
    %v994 = vpop.permute.xlu0 %993
    %995 = vrot.lane.b32.xlu0 %v309, 24
    %v996 = vpop.permute.xlu0 %995
    %v1001 = vsel %vm338, %v978, %v990
    %v1002 = vsel %vm338, %v980, %v992
    %v1003 = vsel %vm338, %v982, %v994
    %v1004 = vsel %vm338, %v984, %v996
    %v1006 = vsel %vm375, %v973, 0
    %v1009 = vsel %vm375, %v974, 0
    %v1012 = vsel %vm375, %v975, 0
    %v1015 = vsel %vm375, %v976, 0
    %v1018 = vsel %vm375, %v1001, 0
    %v1021 = vsel %vm375, %v1002, 0
    %v1024 = vsel %vm375, %v1003, 0
    %v1027 = vsel %vm375, %v1004, 0
    %1029 = vmatprep.subr.mxu0 0.0
    %1030 = vmatpush1.xpose.msra.mxu0 0.0
    %1031 = vmatprep.subr.mxu0 0.0
    %1032 = vmatpush1.xpose.msra.mxu0 0.0
    %1033 = vmatprep.subr.mxu0 0.0
    %1034 = vmatpush1.xpose.msra.mxu0 0.0
    %1035 = vmatprep.subr.mxu0 0.0
    %1036 = vmatpush1.xpose.msra.mxu0 0.0
    %1037 = vmatprep.subr.mxu0 0.0
    %1038 = vmatpush1.xpose.msra.mxu0 0.0
    %1039 = vmatprep.subr.mxu0 0.0
    %1040 = vmatpush1.xpose.msra.mxu0 0.0
    %1041 = vmatprep.subr.mxu0 0.0
    %1042 = vmatpush1.xpose.msra.mxu0 0.0
    %1043 = vmatprep.subr.mxu0 0.0
    %1044 = vmatpush1.xpose.msra.mxu0 0.0
    %1045 = vmatprep.subr.mxu0 0.0
    %1046 = vmatpush1.xpose.msra.mxu0 0.0
    %1047 = vmatprep.subr.mxu0 0.0
    %1048 = vmatpush1.xpose.msra.mxu0 0.0
    %1049 = vmatprep.subr.mxu0 0.0
    %1050 = vmatpush1.xpose.msra.mxu0 0.0
    %1051 = vmatprep.subr.mxu0 0.0
    %1052 = vmatpush1.xpose.msra.mxu0 0.0
    %1053 = vmatprep.subr.mxu0 0.0
    %1054 = vmatpush1.xpose.msra.mxu0 %v1027
    %1055 = vmatprep.subr.mxu0 0.0
    %1056 = vmatpush1.xpose.msra.mxu0 %v1024
    %1057 = vmatprep.subr.mxu0 0.0
    %1058 = vmatpush1.xpose.msra.mxu0 %v1021
    %1059 = vmatprep.subr.mxu0 0.0
    %1060 = vmatpush1.xpose.msra.mxu0 %v1018
    %1061 = vmatprep.subr.mxu0 0.0
    %1062 = vmatpush2.xpose.msra.mxu0 0.0
    %1063 = vmatprep.subr.mxu0 0.0
    %1064 = vmatpush2.xpose.msra.mxu0 0.0
    %1065 = vmatprep.subr.mxu0 0.0
    %1066 = vmatpush2.xpose.msra.mxu0 0.0
    %1067 = vmatprep.subr.mxu0 0.0
    %1068 = vmatpush2.xpose.msra.mxu0 0.0
    %1069 = vmatprep.subr.mxu0 0.0
    %1070 = vmatpush2.xpose.msra.mxu0 0.0
    %1071 = vmatprep.subr.mxu0 0.0
    %1072 = vmatpush2.xpose.msra.mxu0 0.0
    %1073 = vmatprep.subr.mxu0 0.0
    %1074 = vmatpush2.xpose.msra.mxu0 0.0
    %1075 = vmatprep.subr.mxu0 0.0
    %1076 = vmatpush2.xpose.msra.mxu0 0.0
    %1077 = vmatprep.subr.mxu0 0.0
    %1078 = vmatpush2.xpose.msra.mxu0 0.0
    %1079 = vmatprep.subr.mxu0 0.0
    %1080 = vmatpush2.xpose.msra.mxu0 0.0
    %1081 = vmatprep.subr.mxu0 0.0
    %1082 = vmatpush2.xpose.msra.mxu0 0.0
    %1083 = vmatprep.subr.mxu0 0.0
    %1084 = vmatpush2.xpose.msra.mxu0 0.0
    %1085 = vmatprep.subr.mxu0 0.0
    %1086 = vmatpush2.xpose.msra.mxu0 0.0
    %1087 = vmatprep.subr.mxu0 0.0
    %1088 = vmatpush2.xpose.msra.mxu0 0.0
    %1089 = vmatprep.subr.mxu0 0.0
    %1090 = vmatpush2.xpose.msra.mxu0 0.0
    %1091 = vmatprep.subr.mxu0 0.0
    %1092 = vmatpush2.xpose.msra.mxu0 0.0
    %1093 = vmatprep.mubr.f32.mxu0 0.0
    %1094 = vmatmul.mubr.f32.gmra.mxu0 %v1006
    %v1095 = vpop.f32.mrf.mxu0
    %v1096 = vadd.f32 %v310, %v1095
    %v1097 = vpop.f32.mrf.mxu0
    %1098 = vmatprep.mubr.f32.mxu0 0.0
    %1099 = vmatmul.mubr.f32.gmra.mxu0 %v1009
    %v1100 = vpop.f32.mrf.mxu0
    %v1101 = vadd.f32 %v311, %v1100
    %v1102 = vpop.f32.mrf.mxu0
    %1103 = vmatprep.mubr.f32.mxu0 0.0
    %1104 = vmatmul.mubr.f32.gmra.mxu0 %v1012
    %v1105 = vpop.f32.mrf.mxu0
    %v1106 = vadd.f32 %v312, %v1105
    %v1107 = vpop.f32.mrf.mxu0
    %1108 = vmatprep.mubr.f32.mxu0 0.0
    %1109 = vmatmul.mubr.f32.gmra.mxu0 %v1015
    %v1110 = vpop.f32.mrf.mxu0
    %v1111 = vadd.f32 %v313, %v1110
    %v1112 = vpop.f32.mrf.mxu0
    %1113 = vdwg.mxu0
    %v1114 = vsel %vm485, %v1096, -inf
    %1115 = vmax.xlane.f32.xlu0 %v1114
    %v1116 = vpop.xlane.xlu0 %1115
    %v1117 = vsel %vm485, %v1101, -inf
    %1118 = vmax.xlane.f32.xlu0 %v1117
    %v1119 = vpop.xlane.xlu0 %1118
    %v1120 = vsel %vm485, %v1106, -inf
    %1121 = vmax.xlane.f32.xlu0 %v1120
    %v1122 = vpop.xlane.xlu0 %1121
    %v1123 = vsel %vm485, %v1111, -inf
    %1124 = vmax.xlane.f32.xlu0 %v1123
    %v1125 = vpop.xlane.xlu0 %1124
    %v1126 = vsub.f32 %v1096, %v1116
    %v1127 = vsub.f32 %v1101, %v1119
    %v1128 = vsub.f32 %v1106, %v1122
    %v1129 = vsub.f32 %v1111, %v1125
    %v1130 = vmul.f32 %v1126, 1.442695
    %v1131 = vpow.pop %v1130
    %v1132 = vmul.f32 %v1127, 1.442695
    %v1133 = vpow.pop %v1132
    %v1134 = vmul.f32 %v1128, 1.442695
    %v1135 = vpow.pop %v1134
    %v1136 = vmul.f32 %v1129, 1.442695
    %v1137 = vpow.pop %v1136
    %v1138 = vsel %vm485, %v1131, 0.0
    %1139 = vadd.xlane.f32.xlu0 %v1138
    %v1140 = vpop.xlane.xlu0 %1139
    %v1141 = vsel %vm485, %v1133, 0.0
    %1142 = vadd.xlane.f32.xlu0 %v1141
    %v1143 = vpop.xlane.xlu0 %1142
    %v1144 = vsel %vm485, %v1135, 0.0
    %1145 = vadd.xlane.f32.xlu0 %v1144
    %v1146 = vpop.xlane.xlu0 %1145
    %v1147 = vsel %vm485, %v1137, 0.0
    %1148 = vadd.xlane.f32.xlu0 %v1147
    %v1149 = vpop.xlane.xlu0 %1148
    %v1150 = vrcp.pop %v1140
    %v1151 = vrcp.pop %v1143
    %v1152 = vrcp.pop %v1146
    %v1153 = vrcp.pop %v1149
    %v1154 = vmul.f32 %v1131, %v1150
    %v1155 = vmul.f32 %v1133, %v1151
    %v1156 = vmul.f32 %v1135, %v1152
    %v1157 = vmul.f32 %v1137, %v1153
    %1158 = vrot.lane.b32.xlu0 %v129, 96
    %v1159 = vpop.permute.xlu0 %1158
    %1160 = vrot.lane.b32.xlu0 %v135, 96
    %v1161 = vpop.permute.xlu0 %1160
    %1162 = vrot.lane.b32.xlu0 %v141, 96
    %v1163 = vpop.permute.xlu0 %1162
    %1164 = vrot.lane.b32.xlu0 %v147, 96
    %v1165 = vpop.permute.xlu0 %1164
    %v1171 = vsel %vm485, %v1154, 0
    %v1174 = vsel %vm485, %v1155, 0
    %v1177 = vsel %vm485, %v1156, 0
    %v1180 = vsel %vm485, %v1157, 0
    %1182 = vmatprep.subr.mxu0 0.0
    %1183 = vmatpush1.msra.mxu0 0.0
    %1184 = vmatprep.subr.mxu0 0.0
    %1185 = vmatpush1.msra.mxu0 0.0
    %1186 = vmatprep.subr.mxu0 0.0
    %1187 = vmatpush1.msra.mxu0 0.0
    %1188 = vmatprep.subr.mxu0 0.0
    %1189 = vmatpush1.msra.mxu0 0.0
    %1190 = vmatprep.subr.mxu0 0.0
    %1191 = vmatpush1.msra.mxu0 0.0
    %1192 = vmatprep.subr.mxu0 0.0
    %1193 = vmatpush1.msra.mxu0 0.0
    %1194 = vmatprep.subr.mxu0 0.0
    %1195 = vmatpush1.msra.mxu0 0.0
    %1196 = vmatprep.subr.mxu0 0.0
    %1197 = vmatpush1.msra.mxu0 0.0
    %1198 = vmatprep.subr.mxu0 0.0
    %1199 = vmatpush1.msra.mxu0 0.0
    %1200 = vmatprep.subr.mxu0 0.0
    %1201 = vmatpush1.msra.mxu0 0.0
    %1202 = vmatprep.subr.mxu0 0.0
    %1203 = vmatpush1.msra.mxu0 0.0
    %1204 = vmatprep.subr.mxu0 0.0
    %1205 = vmatpush1.msra.mxu0 0.0
    %1206 = vmatprep.subr.mxu0 0.0
    %1207 = vmatpush1.msra.mxu0 %v1165
    %1208 = vmatprep.subr.mxu0 0.0
    %1209 = vmatpush1.msra.mxu0 %v1163
    %1210 = vmatprep.subr.mxu0 0.0
    %1211 = vmatpush1.msra.mxu0 %v1161
    %1212 = vmatprep.subr.mxu0 0.0
    %1213 = vmatpush1.msra.mxu0 %v1159
    %1214 = vmatprep.subr.mxu0 0.0
    %1215 = vmatpush2.msra.mxu0 0.0
    %1216 = vmatprep.subr.mxu0 0.0
    %1217 = vmatpush2.msra.mxu0 0.0
    %1218 = vmatprep.subr.mxu0 0.0
    %1219 = vmatpush2.msra.mxu0 0.0
    %1220 = vmatprep.subr.mxu0 0.0
    %1221 = vmatpush2.msra.mxu0 0.0
    %1222 = vmatprep.subr.mxu0 0.0
    %1223 = vmatpush2.msra.mxu0 0.0
    %1224 = vmatprep.subr.mxu0 0.0
    %1225 = vmatpush2.msra.mxu0 0.0
    %1226 = vmatprep.subr.mxu0 0.0
    %1227 = vmatpush2.msra.mxu0 0.0
    %1228 = vmatprep.subr.mxu0 0.0
    %1229 = vmatpush2.msra.mxu0 0.0
    %1230 = vmatprep.subr.mxu0 0.0
    %1231 = vmatpush2.msra.mxu0 0.0
    %1232 = vmatprep.subr.mxu0 0.0
    %1233 = vmatpush2.msra.mxu0 0.0
    %1234 = vmatprep.subr.mxu0 0.0
    %1235 = vmatpush2.msra.mxu0 0.0
    %1236 = vmatprep.subr.mxu0 0.0
    %1237 = vmatpush2.msra.mxu0 0.0
    %1238 = vmatprep.subr.mxu0 0.0
    %1239 = vmatpush2.msra.mxu0 0.0
    %1240 = vmatprep.subr.mxu0 0.0
    %1241 = vmatpush2.msra.mxu0 0.0
    %1242 = vmatprep.subr.mxu0 0.0
    %1243 = vmatpush2.msra.mxu0 0.0
    %1244 = vmatprep.subr.mxu0 0.0
    %1245 = vmatpush2.msra.mxu0 0.0
    %1246 = vmatprep.mubr.f32.mxu0 0.0
    %1247 = vmatmul.mubr.f32.gmra.mxu0 %v1171
    %v1248 = vpop.f32.mrf.mxu0
    %v1249 = vadd.f32 0.0, %v1248
    %v1250 = vpop.f32.mrf.mxu0
    %1251 = vmatprep.mubr.f32.mxu0 0.0
    %1252 = vmatmul.mubr.f32.gmra.mxu0 %v1174
    %v1253 = vpop.f32.mrf.mxu0
    %v1254 = vadd.f32 0.0, %v1253
    %v1255 = vpop.f32.mrf.mxu0
    %1256 = vmatprep.mubr.f32.mxu0 0.0
    %1257 = vmatmul.mubr.f32.gmra.mxu0 %v1177
    %v1258 = vpop.f32.mrf.mxu0
    %v1259 = vadd.f32 0.0, %v1258
    %v1260 = vpop.f32.mrf.mxu0
    %1261 = vmatprep.mubr.f32.mxu0 0.0
    %1262 = vmatmul.mubr.f32.gmra.mxu0 %v1180
    %v1263 = vpop.f32.mrf.mxu0
    %v1264 = vadd.f32 0.0, %v1263
    %v1265 = vpop.f32.mrf.mxu0
    %1266 = vdwg.mxu0
    %1267 = vrot.lane.b32.xlu0 %v222, 80
    %v1268 = vpop.permute.xlu0 %1267
    %1269 = vrot.lane.b32.xlu0 %v223, 80
    %v1270 = vpop.permute.xlu0 %1269
    %1271 = vrot.lane.b32.xlu0 %v224, 80
    %v1272 = vpop.permute.xlu0 %1271
    %1273 = vrot.lane.b32.xlu0 %v225, 80
    %v1274 = vpop.permute.xlu0 %1273
    %v1279 = vsel %vm338, %v327, %v1268
    %v1280 = vsel %vm338, %v329, %v1270
    %v1281 = vsel %vm338, %v331, %v1272
    %v1282 = vsel %vm338, %v333, %v1274
    %1283 = vrot.lane.b32.xlu0 %v306, 16
    %v1284 = vpop.permute.xlu0 %1283
    %1285 = vrot.lane.b32.xlu0 %v307, 16
    %v1286 = vpop.permute.xlu0 %1285
    %1287 = vrot.lane.b32.xlu0 %v308, 16
    %v1288 = vpop.permute.xlu0 %1287
    %1289 = vrot.lane.b32.xlu0 %v309, 16
    %v1290 = vpop.permute.xlu0 %1289
    %v1295 = vsel %vm338, %v360, %v1284
    %v1296 = vsel %vm338, %v362, %v1286
    %v1297 = vsel %vm338, %v364, %v1288
    %v1298 = vsel %vm338, %v366, %v1290
    %v1300 = vsel %vm375, %v1279, 0
    %v1303 = vsel %vm375, %v1280, 0
    %v1306 = vsel %vm375, %v1281, 0
    %v1309 = vsel %vm375, %v1282, 0
    %v1312 = vsel %vm375, %v1295, 0
    %v1315 = vsel %vm375, %v1296, 0
    %v1318 = vsel %vm375, %v1297, 0
    %v1321 = vsel %vm375, %v1298, 0
    %1323 = vmatprep.subr.mxu0 0.0
    %1324 = vmatpush1.xpose.msra.mxu0 0.0
    %1325 = vmatprep.subr.mxu0 0.0
    %1326 = vmatpush1.xpose.msra.mxu0 0.0
    %1327 = vmatprep.subr.mxu0 0.0
    %1328 = vmatpush1.xpose.msra.mxu0 0.0
    %1329 = vmatprep.subr.mxu0 0.0
    %1330 = vmatpush1.xpose.msra.mxu0 0.0
    %1331 = vmatprep.subr.mxu0 0.0
    %1332 = vmatpush1.xpose.msra.mxu0 0.0
    %1333 = vmatprep.subr.mxu0 0.0
    %1334 = vmatpush1.xpose.msra.mxu0 0.0
    %1335 = vmatprep.subr.mxu0 0.0
    %1336 = vmatpush1.xpose.msra.mxu0 0.0
    %1337 = vmatprep.subr.mxu0 0.0
    %1338 = vmatpush1.xpose.msra.mxu0 0.0
    %1339 = vmatprep.subr.mxu0 0.0
    %1340 = vmatpush1.xpose.msra.mxu0 0.0
    %1341 = vmatprep.subr.mxu0 0.0
    %1342 = vmatpush1.xpose.msra.mxu0 0.0
    %1343 = vmatprep.subr.mxu0 0.0
    %1344 = vmatpush1.xpose.msra.mxu0 0.0
    %1345 = vmatprep.subr.mxu0 0.0
    %1346 = vmatpush1.xpose.msra.mxu0 0.0
    %1347 = vmatprep.subr.mxu0 0.0
    %1348 = vmatpush1.xpose.msra.mxu0 %v1321
    %1349 = vmatprep.subr.mxu0 0.0
    %1350 = vmatpush1.xpose.msra.mxu0 %v1318
    %1351 = vmatprep.subr.mxu0 0.0
    %1352 = vmatpush1.xpose.msra.mxu0 %v1315
    %1353 = vmatprep.subr.mxu0 0.0
    %1354 = vmatpush1.xpose.msra.mxu0 %v1312
    %1355 = vmatprep.subr.mxu0 0.0
    %1356 = vmatpush2.xpose.msra.mxu0 0.0
    %1357 = vmatprep.subr.mxu0 0.0
    %1358 = vmatpush2.xpose.msra.mxu0 0.0
    %1359 = vmatprep.subr.mxu0 0.0
    %1360 = vmatpush2.xpose.msra.mxu0 0.0
    %1361 = vmatprep.subr.mxu0 0.0
    %1362 = vmatpush2.xpose.msra.mxu0 0.0
    %1363 = vmatprep.subr.mxu0 0.0
    %1364 = vmatpush2.xpose.msra.mxu0 0.0
    %1365 = vmatprep.subr.mxu0 0.0
    %1366 = vmatpush2.xpose.msra.mxu0 0.0
    %1367 = vmatprep.subr.mxu0 0.0
    %1368 = vmatpush2.xpose.msra.mxu0 0.0
    %1369 = vmatprep.subr.mxu0 0.0
    %1370 = vmatpush2.xpose.msra.mxu0 0.0
    %1371 = vmatprep.subr.mxu0 0.0
    %1372 = vmatpush2.xpose.msra.mxu0 0.0
    %1373 = vmatprep.subr.mxu0 0.0
    %1374 = vmatpush2.xpose.msra.mxu0 0.0
    %1375 = vmatprep.subr.mxu0 0.0
    %1376 = vmatpush2.xpose.msra.mxu0 0.0
    %1377 = vmatprep.subr.mxu0 0.0
    %1378 = vmatpush2.xpose.msra.mxu0 0.0
    %1379 = vmatprep.subr.mxu0 0.0
    %1380 = vmatpush2.xpose.msra.mxu0 0.0
    %1381 = vmatprep.subr.mxu0 0.0
    %1382 = vmatpush2.xpose.msra.mxu0 0.0
    %1383 = vmatprep.subr.mxu0 0.0
    %1384 = vmatpush2.xpose.msra.mxu0 0.0
    %1385 = vmatprep.subr.mxu0 0.0
    %1386 = vmatpush2.xpose.msra.mxu0 0.0
    %1387 = vmatprep.mubr.f32.mxu0 0.0
    %1388 = vmatmul.mubr.f32.gmra.mxu0 %v1300
    %v1389 = vpop.f32.mrf.mxu0
    %v1390 = vadd.f32 %v310, %v1389
    %v1391 = vpop.f32.mrf.mxu0
    %1392 = vmatprep.mubr.f32.mxu0 0.0
    %1393 = vmatmul.mubr.f32.gmra.mxu0 %v1303
    %v1394 = vpop.f32.mrf.mxu0
    %v1395 = vadd.f32 %v311, %v1394
    %v1396 = vpop.f32.mrf.mxu0
    %1397 = vmatprep.mubr.f32.mxu0 0.0
    %1398 = vmatmul.mubr.f32.gmra.mxu0 %v1306
    %v1399 = vpop.f32.mrf.mxu0
    %v1400 = vadd.f32 %v312, %v1399
    %v1401 = vpop.f32.mrf.mxu0
    %1402 = vmatprep.mubr.f32.mxu0 0.0
    %1403 = vmatmul.mubr.f32.gmra.mxu0 %v1309
    %v1404 = vpop.f32.mrf.mxu0
    %v1405 = vadd.f32 %v313, %v1404
    %v1406 = vpop.f32.mrf.mxu0
    %1407 = vdwg.mxu0
    %v1408 = vsel %vm485, %v1390, -inf
    %1409 = vmax.xlane.f32.xlu0 %v1408
    %v1410 = vpop.xlane.xlu0 %1409
    %v1411 = vsel %vm485, %v1395, -inf
    %1412 = vmax.xlane.f32.xlu0 %v1411
    %v1413 = vpop.xlane.xlu0 %1412
    %v1414 = vsel %vm485, %v1400, -inf
    %1415 = vmax.xlane.f32.xlu0 %v1414
    %v1416 = vpop.xlane.xlu0 %1415
    %v1417 = vsel %vm485, %v1405, -inf
    %1418 = vmax.xlane.f32.xlu0 %v1417
    %v1419 = vpop.xlane.xlu0 %1418
    %v1420 = vsub.f32 %v1390, %v1410
    %v1421 = vsub.f32 %v1395, %v1413
    %v1422 = vsub.f32 %v1400, %v1416
    %v1423 = vsub.f32 %v1405, %v1419
    %v1424 = vmul.f32 %v1420, 1.442695
    %v1425 = vpow.pop %v1424
    %v1426 = vmul.f32 %v1421, 1.442695
    %v1427 = vpow.pop %v1426
    %v1428 = vmul.f32 %v1422, 1.442695
    %v1429 = vpow.pop %v1428
    %v1430 = vmul.f32 %v1423, 1.442695
    %v1431 = vpow.pop %v1430
    %v1432 = vsel %vm485, %v1425, 0.0
    %1433 = vadd.xlane.f32.xlu0 %v1432
    %v1434 = vpop.xlane.xlu0 %1433
    %v1435 = vsel %vm485, %v1427, 0.0
    %1436 = vadd.xlane.f32.xlu0 %v1435
    %v1437 = vpop.xlane.xlu0 %1436
    %v1438 = vsel %vm485, %v1429, 0.0
    %1439 = vadd.xlane.f32.xlu0 %v1438
    %v1440 = vpop.xlane.xlu0 %1439
    %v1441 = vsel %vm485, %v1431, 0.0
    %1442 = vadd.xlane.f32.xlu0 %v1441
    %v1443 = vpop.xlane.xlu0 %1442
    %v1444 = vrcp.pop %v1434
    %v1445 = vrcp.pop %v1437
    %v1446 = vrcp.pop %v1440
    %v1447 = vrcp.pop %v1443
    %v1448 = vmul.f32 %v1425, %v1444
    %v1449 = vmul.f32 %v1427, %v1445
    %v1450 = vmul.f32 %v1429, %v1446
    %v1451 = vmul.f32 %v1431, %v1447
    %1452 = vrot.lane.b32.xlu0 %v129, 80
    %v1453 = vpop.permute.xlu0 %1452
    %1454 = vrot.lane.b32.xlu0 %v135, 80
    %v1455 = vpop.permute.xlu0 %1454
    %1456 = vrot.lane.b32.xlu0 %v141, 80
    %v1457 = vpop.permute.xlu0 %1456
    %1458 = vrot.lane.b32.xlu0 %v147, 80
    %v1459 = vpop.permute.xlu0 %1458
    %v1465 = vsel %vm485, %v1448, 0
    %v1468 = vsel %vm485, %v1449, 0
    %v1471 = vsel %vm485, %v1450, 0
    %v1474 = vsel %vm485, %v1451, 0
    %1476 = vmatprep.subr.mxu0 0.0
    %1477 = vmatpush1.msra.mxu0 0.0
    %1478 = vmatprep.subr.mxu0 0.0
    %1479 = vmatpush1.msra.mxu0 0.0
    %1480 = vmatprep.subr.mxu0 0.0
    %1481 = vmatpush1.msra.mxu0 0.0
    %1482 = vmatprep.subr.mxu0 0.0
    %1483 = vmatpush1.msra.mxu0 0.0
    %1484 = vmatprep.subr.mxu0 0.0
    %1485 = vmatpush1.msra.mxu0 0.0
    %1486 = vmatprep.subr.mxu0 0.0
    %1487 = vmatpush1.msra.mxu0 0.0
    %1488 = vmatprep.subr.mxu0 0.0
    %1489 = vmatpush1.msra.mxu0 0.0
    %1490 = vmatprep.subr.mxu0 0.0
    %1491 = vmatpush1.msra.mxu0 0.0
    %1492 = vmatprep.subr.mxu0 0.0
    %1493 = vmatpush1.msra.mxu0 0.0
    %1494 = vmatprep.subr.mxu0 0.0
    %1495 = vmatpush1.msra.mxu0 0.0
    %1496 = vmatprep.subr.mxu0 0.0
    %1497 = vmatpush1.msra.mxu0 0.0
    %1498 = vmatprep.subr.mxu0 0.0
    %1499 = vmatpush1.msra.mxu0 0.0
    %1500 = vmatprep.subr.mxu0 0.0
    %1501 = vmatpush1.msra.mxu0 %v1459
    %1502 = vmatprep.subr.mxu0 0.0
    %1503 = vmatpush1.msra.mxu0 %v1457
    %1504 = vmatprep.subr.mxu0 0.0
    %1505 = vmatpush1.msra.mxu0 %v1455
    %1506 = vmatprep.subr.mxu0 0.0
    %1507 = vmatpush1.msra.mxu0 %v1453
    %1508 = vmatprep.subr.mxu0 0.0
    %1509 = vmatpush2.msra.mxu0 0.0
    %1510 = vmatprep.subr.mxu0 0.0
    %1511 = vmatpush2.msra.mxu0 0.0
    %1512 = vmatprep.subr.mxu0 0.0
    %1513 = vmatpush2.msra.mxu0 0.0
    %1514 = vmatprep.subr.mxu0 0.0
    %1515 = vmatpush2.msra.mxu0 0.0
    %1516 = vmatprep.subr.mxu0 0.0
    %1517 = vmatpush2.msra.mxu0 0.0
    %1518 = vmatprep.subr.mxu0 0.0
    %1519 = vmatpush2.msra.mxu0 0.0
    %1520 = vmatprep.subr.mxu0 0.0
    %1521 = vmatpush2.msra.mxu0 0.0
    %1522 = vmatprep.subr.mxu0 0.0
    %1523 = vmatpush2.msra.mxu0 0.0
    %1524 = vmatprep.subr.mxu0 0.0
    %1525 = vmatpush2.msra.mxu0 0.0
    %1526 = vmatprep.subr.mxu0 0.0
    %1527 = vmatpush2.msra.mxu0 0.0
    %1528 = vmatprep.subr.mxu0 0.0
    %1529 = vmatpush2.msra.mxu0 0.0
    %1530 = vmatprep.subr.mxu0 0.0
    %1531 = vmatpush2.msra.mxu0 0.0
    %1532 = vmatprep.subr.mxu0 0.0
    %1533 = vmatpush2.msra.mxu0 0.0
    %1534 = vmatprep.subr.mxu0 0.0
    %1535 = vmatpush2.msra.mxu0 0.0
    %1536 = vmatprep.subr.mxu0 0.0
    %1537 = vmatpush2.msra.mxu0 0.0
    %1538 = vmatprep.subr.mxu0 0.0
    %1539 = vmatpush2.msra.mxu0 0.0
    %1540 = vmatprep.mubr.f32.mxu0 0.0
    %1541 = vmatmul.mubr.f32.gmra.mxu0 %v1465
    %v1542 = vpop.f32.mrf.mxu0
    %v1543 = vadd.f32 0.0, %v1542
    %v1544 = vpop.f32.mrf.mxu0
    %1545 = vmatprep.mubr.f32.mxu0 0.0
    %1546 = vmatmul.mubr.f32.gmra.mxu0 %v1468
    %v1547 = vpop.f32.mrf.mxu0
    %v1548 = vadd.f32 0.0, %v1547
    %v1549 = vpop.f32.mrf.mxu0
    %1550 = vmatprep.mubr.f32.mxu0 0.0
    %1551 = vmatmul.mubr.f32.gmra.mxu0 %v1471
    %v1552 = vpop.f32.mrf.mxu0
    %v1553 = vadd.f32 0.0, %v1552
    %v1554 = vpop.f32.mrf.mxu0
    %1555 = vmatprep.mubr.f32.mxu0 0.0
    %1556 = vmatmul.mubr.f32.gmra.mxu0 %v1474
    %v1557 = vpop.f32.mrf.mxu0
    %v1558 = vadd.f32 0.0, %v1557
    %v1559 = vpop.f32.mrf.mxu0
    %1560 = vdwg.mxu0
    %1565 = vrot.lane.b32.xlu0 %v931, 16
    %v1566 = vpop.permute.xlu0 %1565
    %1567 = vrot.lane.b32.xlu0 %v936, 16
    %v1568 = vpop.permute.xlu0 %1567
    %1569 = vrot.lane.b32.xlu0 %v941, 16
    %v1570 = vpop.permute.xlu0 %1569
    %1571 = vrot.lane.b32.xlu0 %v946, 16
    %v1572 = vpop.permute.xlu0 %1571
    %1581 = vrot.lane.b32.xlu0 %v1249, 32
    %v1582 = vpop.permute.xlu0 %1581
    %1583 = vrot.lane.b32.xlu0 %v1254, 32
    %v1584 = vpop.permute.xlu0 %1583
    %1585 = vrot.lane.b32.xlu0 %v1259, 32
    %v1586 = vpop.permute.xlu0 %1585
    %1587 = vrot.lane.b32.xlu0 %v1264, 32
    %v1588 = vpop.permute.xlu0 %1587
    %1597 = vrot.lane.b32.xlu0 %v1543, 48
    %v1598 = vpop.permute.xlu0 %1597
    %1599 = vrot.lane.b32.xlu0 %v1548, 48
    %v1600 = vpop.permute.xlu0 %1599
    %1601 = vrot.lane.b32.xlu0 %v1553, 48
    %v1602 = vpop.permute.xlu0 %1601
    %1603 = vrot.lane.b32.xlu0 %v1558, 48
    %v1604 = vpop.permute.xlu0 %1603
    %v1609 = vsel %vm375, %v609, %v1566
    %v1610 = vsel %vm375, %v614, %v1568
    %v1611 = vsel %vm375, %v619, %v1570
    %v1612 = vsel %vm375, %v624, %v1572
    %v1613 = vsel %vm485, %v1609, %v1582
    %v1614 = vsel %vm485, %v1610, %v1584
    %v1615 = vsel %vm485, %v1611, %v1586
    %v1616 = vsel %vm485, %v1612, %v1588
    %vm1617 = vcmask 392192
    %v1618 = vsel %vm1617, %v1613, %v1598
    %v1619 = vsel %vm1617, %v1614, %v1600
    %v1620 = vsel %vm1617, %v1615, %v1602
    %v1621 = vsel %vm1617, %v1616, %v1604
    %v1622 = vld [vmem:[%s3] sm:$0x1]
    %v1624 = vlaneseq
    %v1625 = vshrl.u32 %v1624, 7
    %v1626 = vsub.s32 0, %v1625
    %v1627 = vrot.slane %v1622, %v1626
    %v1630 = vsel %vm47, %v1618, 0
    %v1633 = vsel %vm47, %v1619, 0
    %v1636 = vsel %vm47, %v1620, 0
    %v1639 = vsel %vm47, %v1621, 0
    %1641 = vmatprep.subr.mxu0 0.0
    %1642 = vmatpush1.msra.mxu0 0.0
    %1643 = vmatprep.subr.mxu0 0.0
    %1644 = vmatpush1.msra.mxu0 0.0
    %1645 = vmatprep.subr.mxu0 0.0
    %1646 = vmatpush1.msra.mxu0 0.0
    %1647 = vmatprep.subr.mxu0 0.0
    %1648 = vmatpush1.msra.mxu0 0.0
    %1649 = vmatprep.subr.mxu0 0.0
    %1650 = vmatpush1.msra.mxu0 0.0
    %1651 = vmatprep.subr.mxu0 0.0
    %1652 = vmatpush1.msra.mxu0 0.0
    %1653 = vmatprep.subr.mxu0 0.0
    %1654 = vmatpush1.msra.mxu0 0.0
    %1655 = vmatprep.subr.mxu0 0.0
    %1656 = vmatpush1.msra.mxu0 0.0
    %1657 = vmatprep.subr.mxu0 0.0
    %1658 = vmatpush1.msra.mxu0 %v321
    %1659 = vmatprep.subr.mxu0 0.0
    %1660 = vmatpush1.msra.mxu0 %v320
    %1661 = vmatprep.subr.mxu0 0.0
    %1662 = vmatpush1.msra.mxu0 %v319
    %1663 = vmatprep.subr.mxu0 0.0
    %1664 = vmatpush1.msra.mxu0 %v318
    %1665 = vmatprep.subr.mxu0 0.0
    %1666 = vmatpush1.msra.mxu0 %v317
    %1667 = vmatprep.subr.mxu0 0.0
    %1668 = vmatpush1.msra.mxu0 %v316
    %1669 = vmatprep.subr.mxu0 0.0
    %1670 = vmatpush1.msra.mxu0 %v315
    %1671 = vmatprep.subr.mxu0 0.0
    %1672 = vmatpush1.msra.mxu0 %v314
    %1673 = vmatprep.subr.mxu0 0.0
    %1674 = vmatpush2.msra.mxu0 0.0
    %1675 = vmatprep.subr.mxu0 0.0
    %1676 = vmatpush2.msra.mxu0 0.0
    %1677 = vmatprep.subr.mxu0 0.0
    %1678 = vmatpush2.msra.mxu0 0.0
    %1679 = vmatprep.subr.mxu0 0.0
    %1680 = vmatpush2.msra.mxu0 0.0
    %1681 = vmatprep.subr.mxu0 0.0
    %1682 = vmatpush2.msra.mxu0 0.0
    %1683 = vmatprep.subr.mxu0 0.0
    %1684 = vmatpush2.msra.mxu0 0.0
    %1685 = vmatprep.subr.mxu0 0.0
    %1686 = vmatpush2.msra.mxu0 0.0
    %1687 = vmatprep.subr.mxu0 0.0
    %1688 = vmatpush2.msra.mxu0 0.0
    %1689 = vmatprep.subr.mxu0 0.0
    %1690 = vmatpush2.msra.mxu0 0.0
    %1691 = vmatprep.subr.mxu0 0.0
    %1692 = vmatpush2.msra.mxu0 0.0
    %1693 = vmatprep.subr.mxu0 0.0
    %1694 = vmatpush2.msra.mxu0 0.0
    %1695 = vmatprep.subr.mxu0 0.0
    %1696 = vmatpush2.msra.mxu0 0.0
    %1697 = vmatprep.subr.mxu0 0.0
    %1698 = vmatpush2.msra.mxu0 0.0
    %1699 = vmatprep.subr.mxu0 0.0
    %1700 = vmatpush2.msra.mxu0 0.0
    %1701 = vmatprep.subr.mxu0 0.0
    %1702 = vmatpush2.msra.mxu0 0.0
    %1703 = vmatprep.subr.mxu0 0.0
    %1704 = vmatpush2.msra.mxu0 0.0
    %1705 = vmatprep.mubr.f32.mxu0 0.0
    %1706 = vmatmul.mubr.f32.gmra.mxu0 %v1630
    %v1707 = vpop.f32.mrf.mxu0
    %v1708 = vadd.f32 %v1627, %v1707
    %v1709 = vpop.f32.mrf.mxu0
    %1710 = vmatprep.mubr.f32.mxu0 0.0
    %1711 = vmatmul.mubr.f32.gmra.mxu0 %v1633
    %v1712 = vpop.f32.mrf.mxu0
    %v1713 = vadd.f32 %v1627, %v1712
    %v1714 = vpop.f32.mrf.mxu0
    %1715 = vmatprep.mubr.f32.mxu0 0.0
    %1716 = vmatmul.mubr.f32.gmra.mxu0 %v1636
    %v1717 = vpop.f32.mrf.mxu0
    %v1718 = vadd.f32 %v1627, %v1717
    %v1719 = vpop.f32.mrf.mxu0
    %1720 = vmatprep.mubr.f32.mxu0 0.0
    %1721 = vmatmul.mubr.f32.gmra.mxu0 %v1639
    %v1722 = vpop.f32.mrf.mxu0
    %v1723 = vadd.f32 %v1627, %v1722
    %v1724 = vpop.f32.mrf.mxu0
    %1725 = vdwg.mxu0
    %1726 = vst.msk [vmem:[#allocation2] sm:$0xff] %vm47, %v1708
    %1727 = vst.msk [vmem:[#allocation2 + $0x8] sm:$0xff] %vm47, %v1713
    %1728 = vst.msk [vmem:[#allocation2 + $0x10] sm:$0xff] %vm47, %v1718
    %1729 = vst.msk [vmem:[#allocation2 + $0x18] sm:$0xff] %vm47, %v1723
    // Predicated region
    $region30: #{multi_head_attention.1} parent=1 // pred_check
      _
    $region31: #{multi_head_attention.1} parent=1 // pred_check_branch
      %1731 = sbr.rel (0) target = $region33
    $region32: #{multi_head_attention.1} parent=1 // pred_region
      %s1733 = ssub.s32 512, 512
      %1734 = vsyncadd [#allocation3], %s1733
      %s1735 = sshll.u32 [#allocation2], 4
      %s1736 = int_to_ptr.vmem [resolvable:$true] %s1735
      %1741 = dma.vmem_to_hbm [thread:$0]  %s1736, 512, %s7, [#allocation3], 128, 128, 8
    $region33: #{multi_head_attention.1} parent=1 // pred_fallthru
      _
    // Predicated region
    $region34: #{multi_head_attention.1} parent=1 // pred_check
      _
    $region35: #{multi_head_attention.1} parent=1 // pred_check_branch
      %1743 = sbr.rel (0) target = $region37
    $region36: #{multi_head_attention.1} parent=1 // pred_region
      %1744 = dma.done [#allocation3], 512
    $region37: #{multi_head_attention.1} parent=1 // pred_fallthru
      _
    %1745 = vsyncpa [#allocation3], 1

</llo_original>
